<compile_context>
chip_gen: v6e
topology: v6e:2x2x1
jax: 0.10.0
libtpu: 0.0.40
codegen_flags: <defaults>
</compile_context>

<pallas_src>
import functools

import jax
import jax.numpy as jnp
from jax import lax
from jax.experimental import pallas as pl
from jax.experimental.pallas import tpu as pltpu


# ---------------------------------------------------------------------------
# Fused kernel: single step, batch folded into lanes, everything VMEM-resident.
# Layout inside the kernel: channels on sublanes, flattened N*H*W on lanes.
# ---------------------------------------------------------------------------
def _fused_kernel(*refs, W, NHW, inp, has_expand, use_res, dw_dtype):
    if has_expand:
        x_ref, we_ref, wm_ref, bd_ref, wp_ref, bp_ref, o_ref = refs
    else:
        x_ref, wm_ref, bd_ref, wp_ref, bp_ref, o_ref = refs

    x_full = x_ref[...]                                 # (inp[+1], NHW) f32

    # ---- expansion 1x1 conv (BN scale folded; bias folded into MXU via ones row) ---
    if has_expand:
        h = jnp.dot(we_ref[...], x_full, preferred_element_type=jnp.float32)
        h = jnp.maximum(h, 0.0)                         # (hidden, NHW)
        x_res = x_full[:inp, :]                         # residual input (tile-aligned slice)
    else:
        h = x_full                                      # hidden == inp
        x_res = x_full

    h = h.astype(dw_dtype)                              # bf16 on v6e/v7x, f32 otherwise

    # ---- depthwise 3x3, stride 1, pad 1 (BN folded) ---------------------------------
    # tap (di, dj): value at flat f is h[f + di*W + dj]; realized as an XLU lane roll.
    # Boundary masks (incl. cross-image boundaries of the folded batch) are pre-folded
    # into the per-tap weights wm[k] -> 1 mul + 1 add per tap on the VPU.
    acc = None
    k = 0
    for di in (-1, 0, 1):
        for dj in (-1, 0, 1):
            s = di * W + dj
            t = h if s == 0 else pltpu.roll(h, shift=(-s) % NHW, axis=1)
            contrib = t * wm_ref[k]                     # (hidden, NHW)
            acc = contrib if acc is None else acc + contrib
            k += 1
    d = jnp.maximum(acc + bd_ref[...], 0.0)             # (hidden, NHW), dw_dtype

    # ---- projection 1x1 conv (BN folded) + bias, no ReLU, + residual ----------------
    y = jnp.dot(wp_ref[...], d, preferred_element_type=jnp.float32) + bp_ref[...]
    if use_res:
        y = y + x_res
    o_ref[...] = y.astype(o_ref.dtype)                  # lane-dense (oup, NHW) store


# ---------------------------------------------------------------------------
# Wrapper
# ---------------------------------------------------------------------------
def inverted_residual(x_nchw, p, *, stride, expand_ratio, inp, oup, dw_dtype=None):
    # TODO(synk): stride=2 (strided depthwise) path not implemented.
    assert stride == 1
    use_res = (stride == 1) and (inp == oup)
    has_expand = expand_ratio != 1
    hidden = int(round(inp * expand_ratio))

    N, Cin, H, W = x_nchw.shape
    assert Cin == inp
    HW, NHW = H * W, N * H * W
    f32 = jnp.float32

    if dw_dtype is None:
        kind = jax.devices()[0].device_kind.lower()
        dw_dtype = jnp.bfloat16 if ("v6" in kind or "v7" in kind or "7x" in kind) else f32

    # Batch folded into the lane axis: (N, C, H, W) -> (C, N*H*W).
    x2d = jnp.transpose(x_nchw.astype(f32).reshape(N, inp, HW), (1, 0, 2)).reshape(inp, NHW)

    # Fold BN (eval-mode running stats) scale into conv weights at trace time.
    wdf = (p["w_dw"].astype(f32) * p["s_dw"].astype(f32)[None, None, :]
           ).reshape(9, hidden)                          # (9, hidden), row k = kh*3 + kw
    bd = p["b_dw"].reshape(hidden, 1).astype(dw_dtype)
    wp = (p["w_proj"].astype(f32) * p["s_proj"].astype(f32)[None, :]).T.astype(dw_dtype)
    bp = p["b_proj"].reshape(oup, 1).astype(f32)

    # Per-tap boundary masks on the flattened N*HW axis (zero-padding semantics; also
    # zero wherever a roll would cross an image boundary), folded into the dw weights.
    fi = jnp.arange(NHW, dtype=jnp.int32)
    ri, ci = (fi % HW) // W, fi % W
    rows = []
    for di in (-1, 0, 1):
        for dj in (-1, 0, 1):
            ok = (ri + di >= 0) & (ri + di < H) & (ci + dj >= 0) & (ci + dj < W)
            rows.append(ok.astype(f32))
    masks = jnp.stack(rows, axis=0)                      # (9, NHW)
    wm = (wdf[:, :, None] * masks[:, None, :]).astype(dw_dtype)   # (9, hidden, NHW)

    args, in_specs = [], []
    if has_expand:
        # Fold the expand bias into the MXU: ones row on x, bias column on we.
        x_in = jnp.concatenate([x2d, jnp.ones((1, NHW), f32)], axis=0)      # (inp+1, NHW)
        we = (p["w_expand"].astype(f32) * p["s_expand"].astype(f32)[None, :]).T
        we = jnp.concatenate([we, p["b_expand"].reshape(hidden, 1).astype(f32)], axis=1)
        args += [x_in, we]
        in_specs += [pl.BlockSpec((inp + 1, NHW), lambda i: (0, 0)),
                     pl.BlockSpec((hidden, inp + 1), lambda i: (0, 0))]
    else:
        args += [x2d]
        in_specs += [pl.BlockSpec((inp, NHW), lambda i: (0, 0))]

    args += [wm, bd, wp, bp]
    in_specs += [pl.BlockSpec((9, hidden, NHW), lambda i: (0, 0, 0)),
                 pl.BlockSpec((hidden, 1), lambda i: (0, 0)),
                 pl.BlockSpec((oup, hidden), lambda i: (0, 0)),
                 pl.BlockSpec((oup, 1), lambda i: (0, 0))]

    flops = 2 * NHW * ((hidden * (inp + 1) if has_expand else 0)
                       + 9 * hidden + hidden * oup) + (oup * NHW if use_res else 0)
    bytes_accessed = sum(int(a.size) * a.dtype.itemsize for a in args) + 4 * oup * NHW
    cost = pl.CostEstimate(flops=int(flops), transcendentals=0,
                           bytes_accessed=int(bytes_accessed))

    kernel = functools.partial(_fused_kernel, W=W, NHW=NHW, inp=inp,
                               has_expand=has_expand, use_res=use_res,
                               dw_dtype=dw_dtype)

    out = pl.pallas_call(
        kernel,
        grid=(1,),
        in_specs=in_specs,
        out_specs=pl.BlockSpec((oup, NHW), lambda i: (0, 0)),
        out_shape=jax.ShapeDtypeStruct((oup, NHW), f32),
        compiler_params=pltpu.CompilerParams(dimension_semantics=("arbitrary",)),
        cost_estimate=cost,
    )(*args)
    # TODO(synk): for real MobileNetV2 shapes (112x112, hidden up to 384) tile the grid
    # over H-stripes (multiples of 8 rows, halo via the same roll+mask trick), set
    # vmem_limit_bytes explicitly, and keep stripes >= 512-lane slabs; f32 intermediates
    # fit v5e/v6e's 128 MiB VMEM but need bf16 + striping for v7x's 64 MiB.
    return jnp.transpose(out.reshape(oup, N, HW), (1, 0, 2)).reshape(N, oup, H, W)


# ---------------------------------------------------------------------------
# Pure-JAX reference (correctness check only; not the hot path).
# ---------------------------------------------------------------------------
def ref_inverted_residual(x, p, *, inp, oup, hidden):
    dn = ("NCHW", "OIHW", "NCHW")

    def bn(y, s, b):
        return y * s.reshape(1, -1, 1, 1) + b.reshape(1, -1, 1, 1)

    w1 = p["w_expand"].T.reshape(hidden, inp, 1, 1)
    h = lax.conv_general_dilated(x, w1, (1, 1), "VALID", dimension_numbers=dn)
    h = jnp.maximum(bn(h, p["s_expand"], p["b_expand"]), 0.0)

    wd = jnp.transpose(p["w_dw"], (2, 0, 1))[:, None, :, :]  # (C,1,3,3)
    h = lax.conv_general_dilated(h, wd, (1, 1), ((1, 1), (1, 1)),
                                 dimension_numbers=dn, feature_group_count=hidden)
    h = jnp.maximum(bn(h, p["s_dw"], p["b_dw"]), 0.0)

    w2 = p["w_proj"].T.reshape(oup, hidden, 1, 1)
    h = lax.conv_general_dilated(h, w2, (1, 1), "VALID", dimension_numbers=dn)
    h = bn(h, p["s_proj"], p["b_proj"])
    return x + h


# ---------------------------------------------------------------------------
def _make_bn(key, c, eps=1e-5):
    k1, k2, k3, k4 = jax.random.split(key, 4)
    gamma = 1.0 + 0.1 * jax.random.normal(k1, (c,), jnp.float32)
    beta = 0.1 * jax.random.normal(k2, (c,), jnp.float32)
    mean = 0.1 * jax.random.normal(k3, (c,), jnp.float32)
    var = 0.5 + jnp.abs(jax.random.normal(k4, (c,), jnp.float32))
    scale = gamma / jnp.sqrt(var + eps)
    bias = beta - mean * scale
    return scale, bias


if __name__ == "__main__":
    # InvertedResidual(inp=8, oup=8, stride=1, expand_ratio=4) -> hidden_dim=32
    inp, oup, stride, expand_ratio = 8, 8, 1, 4
    hidden = int(round(inp * expand_ratio))
    N, H, W = 2, 16, 16

    key = jax.random.PRNGKey(0)
    ks = jax.random.split(key, 8)

    params = {
        "w_expand": 0.1 * jax.random.normal(ks[0], (inp, hidden), jnp.float32),
        "w_dw":     0.1 * jax.random.normal(ks[1], (3, 3, hidden), jnp.float32),
        "w_proj":   0.1 * jax.random.normal(ks[2], (hidden, oup), jnp.float32),
    }
    params["s_expand"], params["b_expand"] = _make_bn(ks[3], hidden)
    params["s_dw"],     params["b_dw"]     = _make_bn(ks[4], hidden)
    params["s_proj"],   params["b_proj"]   = _make_bn(ks[5], oup)

    x = jax.random.normal(ks[6], (N, inp, H, W), jnp.float32)

    # bf16 depthwise path only on chips with a bf16-native VPU (v6e / v7x).
    kind = jax.devices()[0].device_kind.lower()
    use_bf16 = ("v6" in kind) or ("v7" in kind) or ("7x" in kind)
    dw_dtype = jnp.bfloat16 if use_bf16 else jnp.float32

    out = inverted_residual(x, params, stride=stride, expand_ratio=expand_ratio,
                            inp=inp, oup=oup, dw_dtype=dw_dtype)
    out = jax.block_until_ready(out)

    ref = ref_inverted_residual(x, params, inp=inp, oup=oup, hidden=hidden)
    ref = jax.block_until_ready(ref)

    tol = 5e-2 if use_bf16 else 1e-4
    assert out.shape == (N, oup, H, W)
    assert jnp.allclose(out, ref, atol=tol, rtol=tol), float(jnp.max(jnp.abs(out - ref)))
    print("KERNEL_OK")
</pallas_src>

<mosaic_0001>
module attributes {stable_mosaic.version = 11 : i64} {
  func.func @_fused_kernel(%arg0: i32, %arg1: memref<9x512xf32, #tpu.memory_space<vmem>>, %arg2: memref<32x9xf32, #tpu.memory_space<vmem>>, %arg3: memref<9x32x512xf32, #tpu.memory_space<vmem>>, %arg4: memref<32x1xf32, #tpu.memory_space<vmem>>, %arg5: memref<8x32xf32, #tpu.memory_space<vmem>>, %arg6: memref<8x1xf32, #tpu.memory_space<vmem>>, %arg7: memref<8x512xf32, #tpu.memory_space<vmem>>) attributes {dimension_semantics = [#tpu.dimension_semantics<arbitrary>], iteration_bounds = array<i64: 1>, scalar_prefetch = 0 : i64, scratch_operands = 0 : i64, tpu.core_type = #tpu.core_type<tc>, window_params = [{pipeline_mode = #tpu.pipeline_mode<synchronous>, transform_indices = @transform_0, window_bounds = array<i64: 9, 512>}, {pipeline_mode = #tpu.pipeline_mode<synchronous>, transform_indices = @transform_1, window_bounds = array<i64: 32, 9>}, {pipeline_mode = #tpu.pipeline_mode<synchronous>, transform_indices = @transform_2, window_bounds = array<i64: 9, 32, 512>}, {pipeline_mode = #tpu.pipeline_mode<synchronous>, transform_indices = @transform_3, window_bounds = array<i64: 32, 1>}, {pipeline_mode = #tpu.pipeline_mode<synchronous>, transform_indices = @transform_4, window_bounds = array<i64: 8, 32>}, {pipeline_mode = #tpu.pipeline_mode<synchronous>, transform_indices = @transform_5, window_bounds = array<i64: 8, 1>}, {pipeline_mode = #tpu.pipeline_mode<synchronous>, transform_indices = @transform_6, window_bounds = array<i64: 8, 512>}]} {
    %c0 = arith.constant 0 : index
    %c0_0 = arith.constant 0 : index
    %0 = vector.load %arg1[%c0, %c0_0] : memref<9x512xf32, #tpu.memory_space<vmem>>, vector<9x512xf32>
    %c0_1 = arith.constant 0 : index
    %c0_2 = arith.constant 0 : index
    %1 = vector.load %arg2[%c0_1, %c0_2] : memref<32x9xf32, #tpu.memory_space<vmem>>, vector<32x9xf32>
    %cst = arith.constant dense<0.000000e+00> : vector<32x512xf32>
    %2 = tpu.matmul %1, %0, %cst {dimension_numbers = #tpu.dot_dimension_numbers<[1], [0], [0], [1], [0, 0, 1, 1], [], []>} : vector<32x9xf32>, vector<9x512xf32>, vector<32x512xf32> -> vector<32x512xf32>
    %cst_3 = arith.constant 0.000000e+00 : f32
    %3 = vector.broadcast %cst_3 : f32 to vector<32x512xf32>
    %4 = arith.maximumf %2, %3 : vector<32x512xf32>
    %5 = vector.extract_strided_slice %0 {offsets = [0, 0], sizes = [8, 512], strides = [1, 1]} : vector<9x512xf32> to vector<8x512xf32>
    %c17_i32 = arith.constant 17 : i32
    %6 = tpu.dynamic_rotate %4 by %c17_i32 dim 1 : vector<32x512xf32>, i32 -> vector<32x512xf32>
    %c0_4 = arith.constant 0 : index
    %c0_5 = arith.constant 0 : index
    %c0_6 = arith.constant 0 : index
    %7 = vector.load %arg3[%c0_4, %c0_5, %c0_6] : memref<9x32x512xf32, #tpu.memory_space<vmem>>, vector<1x32x512xf32>
    %8 = vector.shape_cast %7 : vector<1x32x512xf32> to vector<32x512xf32>
    %9 = arith.mulf %6, %8 : vector<32x512xf32>
    %c16_i32 = arith.constant 16 : i32
    %10 = tpu.dynamic_rotate %4 by %c16_i32 dim 1 : vector<32x512xf32>, i32 -> vector<32x512xf32>
    %c1 = arith.constant 1 : index
    %c0_7 = arith.constant 0 : index
    %c0_8 = arith.constant 0 : index
    %11 = vector.load %arg3[%c1, %c0_7, %c0_8] : memref<9x32x512xf32, #tpu.memory_space<vmem>>, vector<1x32x512xf32>
    %12 = vector.shape_cast %11 : vector<1x32x512xf32> to vector<32x512xf32>
    %13 = arith.mulf %10, %12 : vector<32x512xf32>
    %14 = arith.addf %9, %13 : vector<32x512xf32>
    %c15_i32 = arith.constant 15 : i32
    %15 = tpu.dynamic_rotate %4 by %c15_i32 dim 1 : vector<32x512xf32>, i32 -> vector<32x512xf32>
    %c2 = arith.constant 2 : index
    %c0_9 = arith.constant 0 : index
    %c0_10 = arith.constant 0 : index
    %16 = vector.load %arg3[%c2, %c0_9, %c0_10] : memref<9x32x512xf32, #tpu.memory_space<vmem>>, vector<1x32x512xf32>
    %17 = vector.shape_cast %16 : vector<1x32x512xf32> to vector<32x512xf32>
    %18 = arith.mulf %15, %17 : vector<32x512xf32>
    %19 = arith.addf %14, %18 : vector<32x512xf32>
    %c1_i32 = arith.constant 1 : i32
    %20 = tpu.dynamic_rotate %4 by %c1_i32 dim 1 : vector<32x512xf32>, i32 -> vector<32x512xf32>
    %c3 = arith.constant 3 : index
    %c0_11 = arith.constant 0 : index
    %c0_12 = arith.constant 0 : index
    %21 = vector.load %arg3[%c3, %c0_11, %c0_12] : memref<9x32x512xf32, #tpu.memory_space<vmem>>, vector<1x32x512xf32>
    %22 = vector.shape_cast %21 : vector<1x32x512xf32> to vector<32x512xf32>
    %23 = arith.mulf %20, %22 : vector<32x512xf32>
    %24 = arith.addf %19, %23 : vector<32x512xf32>
    %c4 = arith.constant 4 : index
    %c0_13 = arith.constant 0 : index
    %c0_14 = arith.constant 0 : index
    %25 = vector.load %arg3[%c4, %c0_13, %c0_14] : memref<9x32x512xf32, #tpu.memory_space<vmem>>, vector<1x32x512xf32>
    %26 = vector.shape_cast %25 : vector<1x32x512xf32> to vector<32x512xf32>
    %27 = arith.mulf %4, %26 : vector<32x512xf32>
    %28 = arith.addf %24, %27 : vector<32x512xf32>
    %c511_i32 = arith.constant 511 : i32
    %29 = tpu.dynamic_rotate %4 by %c511_i32 dim 1 : vector<32x512xf32>, i32 -> vector<32x512xf32>
    %c5 = arith.constant 5 : index
    %c0_15 = arith.constant 0 : index
    %c0_16 = arith.constant 0 : index
    %30 = vector.load %arg3[%c5, %c0_15, %c0_16] : memref<9x32x512xf32, #tpu.memory_space<vmem>>, vector<1x32x512xf32>
    %31 = vector.shape_cast %30 : vector<1x32x512xf32> to vector<32x512xf32>
    %32 = arith.mulf %29, %31 : vector<32x512xf32>
    %33 = arith.addf %28, %32 : vector<32x512xf32>
    %c497_i32 = arith.constant 497 : i32
    %34 = tpu.dynamic_rotate %4 by %c497_i32 dim 1 : vector<32x512xf32>, i32 -> vector<32x512xf32>
    %c6 = arith.constant 6 : index
    %c0_17 = arith.constant 0 : index
    %c0_18 = arith.constant 0 : index
    %35 = vector.load %arg3[%c6, %c0_17, %c0_18] : memref<9x32x512xf32, #tpu.memory_space<vmem>>, vector<1x32x512xf32>
    %36 = vector.shape_cast %35 : vector<1x32x512xf32> to vector<32x512xf32>
    %37 = arith.mulf %34, %36 : vector<32x512xf32>
    %38 = arith.addf %33, %37 : vector<32x512xf32>
    %c496_i32 = arith.constant 496 : i32
    %39 = tpu.dynamic_rotate %4 by %c496_i32 dim 1 : vector<32x512xf32>, i32 -> vector<32x512xf32>
    %c7 = arith.constant 7 : index
    %c0_19 = arith.constant 0 : index
    %c0_20 = arith.constant 0 : index
    %40 = vector.load %arg3[%c7, %c0_19, %c0_20] : memref<9x32x512xf32, #tpu.memory_space<vmem>>, vector<1x32x512xf32>
    %41 = vector.shape_cast %40 : vector<1x32x512xf32> to vector<32x512xf32>
    %42 = arith.mulf %39, %41 : vector<32x512xf32>
    %43 = arith.addf %38, %42 : vector<32x512xf32>
    %c495_i32 = arith.constant 495 : i32
    %44 = tpu.dynamic_rotate %4 by %c495_i32 dim 1 : vector<32x512xf32>, i32 -> vector<32x512xf32>
    %c8 = arith.constant 8 : index
    %c0_21 = arith.constant 0 : index
    %c0_22 = arith.constant 0 : index
    %45 = vector.load %arg3[%c8, %c0_21, %c0_22] : memref<9x32x512xf32, #tpu.memory_space<vmem>>, vector<1x32x512xf32>
    %46 = vector.shape_cast %45 : vector<1x32x512xf32> to vector<32x512xf32>
    %47 = arith.mulf %44, %46 : vector<32x512xf32>
    %48 = arith.addf %43, %47 : vector<32x512xf32>
    %c0_23 = arith.constant 0 : index
    %c0_24 = arith.constant 0 : index
    %49 = vector.load %arg4[%c0_23, %c0_24] : memref<32x1xf32, #tpu.memory_space<vmem>>, vector<32x1xf32>
    %50 = vector.broadcast %49 : vector<32x1xf32> to vector<32x512xf32>
    %51 = arith.addf %48, %50 : vector<32x512xf32>
    %cst_25 = arith.constant 0.000000e+00 : f32
    %52 = vector.broadcast %cst_25 : f32 to vector<32x512xf32>
    %53 = arith.maximumf %51, %52 : vector<32x512xf32>
    %c0_26 = arith.constant 0 : index
    %c0_27 = arith.constant 0 : index
    %54 = vector.load %arg5[%c0_26, %c0_27] : memref<8x32xf32, #tpu.memory_space<vmem>>, vector<8x32xf32>
    %cst_28 = arith.constant dense<0.000000e+00> : vector<8x512xf32>
    %55 = tpu.matmul %54, %53, %cst_28 {dimension_numbers = #tpu.dot_dimension_numbers<[1], [0], [0], [1], [0, 0, 1, 1], [], []>} : vector<8x32xf32>, vector<32x512xf32>, vector<8x512xf32> -> vector<8x512xf32>
    %c0_29 = arith.constant 0 : index
    %c0_30 = arith.constant 0 : index
    %56 = vector.load %arg6[%c0_29, %c0_30] : memref<8x1xf32, #tpu.memory_space<vmem>>, vector<8x1xf32>
    %57 = vector.broadcast %56 : vector<8x1xf32> to vector<8x512xf32>
    %58 = arith.addf %55, %57 : vector<8x512xf32>
    %59 = arith.addf %58, %5 : vector<8x512xf32>
    %c0_31 = arith.constant 0 : index
    %c0_32 = arith.constant 0 : index
    %60 = vector.load %arg7[%c0_31, %c0_32] : memref<8x512xf32, #tpu.memory_space<vmem>>, vector<8x512xf32>
    tpu.vector_store %arg7[%c0_31, %c0_32], %59 {strides = array<i32>} : memref<8x512xf32, #tpu.memory_space<vmem>>, vector<8x512xf32>,
    return
  }
  func.func @transform_0(%arg0: i32) -> (i32, i32) {
    %c0_i32 = arith.constant 0 : i32
    %c0_i32_0 = arith.constant 0 : i32
    %c0_i32_1 = arith.constant 0 : i32
    return %c0_i32, %c0_i32_0 : i32, i32
  }
  func.func @transform_1(%arg0: i32) -> (i32, i32) {
    %c0_i32 = arith.constant 0 : i32
    %c0_i32_0 = arith.constant 0 : i32
    %c0_i32_1 = arith.constant 0 : i32
    return %c0_i32, %c0_i32_0 : i32, i32
  }
  func.func @transform_2(%arg0: i32) -> (i32, i32, i32) {
    %c0_i32 = arith.constant 0 : i32
    %c0_i32_0 = arith.constant 0 : i32
    %c0_i32_1 = arith.constant 0 : i32
    %c0_i32_2 = arith.constant 0 : i32
    return %c0_i32, %c0_i32_0, %c0_i32_1 : i32, i32, i32
  }
  func.func @transform_3(%arg0: i32) -> (i32, i32) {
    %c0_i32 = arith.constant 0 : i32
    %c0_i32_0 = arith.constant 0 : i32
    %c0_i32_1 = arith.constant 0 : i32
    return %c0_i32, %c0_i32_0 : i32, i32
  }
  func.func @transform_4(%arg0: i32) -> (i32, i32) {
    %c0_i32 = arith.constant 0 : i32
    %c0_i32_0 = arith.constant 0 : i32
    %c0_i32_1 = arith.constant 0 : i32
    return %c0_i32, %c0_i32_0 : i32, i32
  }
  func.func @transform_5(%arg0: i32) -> (i32, i32) {
    %c0_i32 = arith.constant 0 : i32
    %c0_i32_0 = arith.constant 0 : i32
    %c0_i32_1 = arith.constant 0 : i32
    return %c0_i32, %c0_i32_0 : i32, i32
  }
  func.func @transform_6(%arg0: i32) -> (i32, i32) {
    %c0_i32 = arith.constant 0 : i32
    %c0_i32_0 = arith.constant 0 : i32
    %c0_i32_1 = arith.constant 0 : i32
    return %c0_i32, %c0_i32_0 : i32, i32
  }
}

</mosaic_0001>

<llo_original>
// kernel: tpu_custom_call.1
$region0: #{tpu_custom_call.1}
  #allocation0 [shape = 'u32[]', space=smem, size = 0x4, offset = 0x4, fixed_abs, tag = 'smem constant byte address 0x4 - core index']
  #allocation1 [shape = 'u32[144,128]{1,0:T(1,128)}', space=vmem, size = 0x12000, scoped, tag = 'internal scratch']
  %s0 = inlined_call_operand.vmem [shape: f32[9,512], index: 0, kind: input, shape index: {}]
  %s1 = inlined_call_operand.vmem [shape: f32[32,9], index: 1, kind: input, shape index: {}]
  %s2 = inlined_call_operand.hbm [shape: f32[9,32,512], index: 2, kind: input, shape index: {}]
  %s3 = inlined_call_operand.vmem [shape: f32[32,1], index: 3, kind: input, shape index: {}]
  %s4 = inlined_call_operand.vmem [shape: f32[8,32], index: 4, kind: input, shape index: {}]
  %s5 = inlined_call_operand.vmem [shape: f32[8,1], index: 5, kind: input, shape index: {}]
  %s6 = inlined_call_operand.hbm [shape: f32[8,512], index: 6, kind: output, shape index: {}]
  %s7 = sld [smem:[#allocation0]]
  $region38: #{tpu_custom_call.1} parent=0
    _
  %s9 = ssub.s32 1, %s7
  %s10 = scalar_select 0, %s9, %s7
  $region1: #{tpu_custom_call.1} parent=0
    #allocation2 [shape = 'u8[589824]{0}', space=vmem, size = 0x90000, scoped, tag = 'input window, operand 2, single buffered']
    #allocation3 [shape = 's32[1]{0}', space=sflag, size = 0x4, scoped, tag = 'scoped memory for tpu_custom_call.1']
    #allocation4 [shape = 's32[1]{0}', space=sflag, size = 0x4, scoped, tag = 'scoped memory for tpu_custom_call.1']
    #allocation5 [shape = 'u8[16384]{0}', space=vmem, size = 0x4000, scoped, tag = 'output window, operand 0, single buffered']
    %11 = vsyncpa [#allocation3], 0
    %12 = vsyncpa [#allocation4], 0
    // Predicated region
    $region2: #{tpu_custom_call.1} parent=1 // pred_check
      _
    $region3: #{tpu_custom_call.1} parent=1 // pred_check_branch
      %14 = sbr.rel (0) target = $region5
    $region4: #{tpu_custom_call.1} parent=1 // pred_region
      _
    $region5: #{tpu_custom_call.1} parent=1 // pred_fallthru
      _
    // Predicated region
    $region6: #{tpu_custom_call.1} parent=1 // pred_check
      _
    $region7: #{tpu_custom_call.1} parent=1 // pred_check_branch
      %16 = sbr.rel (0) target = $region9
    $region8: #{tpu_custom_call.1} parent=1 // pred_region
      _
    $region9: #{tpu_custom_call.1} parent=1 // pred_fallthru
      _
    // Predicated region
    $region10: #{tpu_custom_call.1} parent=1 // pred_check
      _
    $region11: #{tpu_custom_call.1} parent=1 // pred_check_branch
      %18 = sbr.rel (0) target = $region13
    $region12: #{tpu_custom_call.1} parent=1 // pred_region
      %s20 = ssub.s32 18432, 18432
      %21 = vsyncadd [#allocation3], %s20
      %s22 = sshll.u32 [#allocation2], 4
      %s23 = int_to_ptr.vmem [resolvable:$true] %s22
      %28 = dma.hbm_to_vmem [thread:$0]  %s2, 18432, %s23, [#allocation3], 512, 512, 32
    $region13: #{tpu_custom_call.1} parent=1 // pred_fallthru
      _
    // Predicated region
    $region14: #{tpu_custom_call.1} parent=1 // pred_check
      _
    $region15: #{tpu_custom_call.1} parent=1 // pred_check_branch
      %30 = sbr.rel (0) target = $region17
    $region16: #{tpu_custom_call.1} parent=1 // pred_region
      _
    $region17: #{tpu_custom_call.1} parent=1 // pred_fallthru
      _
    // Predicated region
    $region18: #{tpu_custom_call.1} parent=1 // pred_check
      _
    $region19: #{tpu_custom_call.1} parent=1 // pred_check_branch
      %32 = sbr.rel (0) target = $region21
    $region20: #{tpu_custom_call.1} parent=1 // pred_region
      _
    $region21: #{tpu_custom_call.1} parent=1 // pred_fallthru
      _
    // Predicated region
    $region22: #{tpu_custom_call.1} parent=1 // pred_check
      _
    $region23: #{tpu_custom_call.1} parent=1 // pred_check_branch
      %34 = sbr.rel (0) target = $region25
    $region24: #{tpu_custom_call.1} parent=1 // pred_region
      _
    $region25: #{tpu_custom_call.1} parent=1 // pred_fallthru
      _
    // Predicated region
    $region26: #{tpu_custom_call.1} parent=1 // pred_check
      _
    $region27: #{tpu_custom_call.1} parent=1 // pred_check_branch
      %36 = sbr.rel (0) target = $region29
    $region28: #{tpu_custom_call.1} parent=1 // pred_region
      %37 = dma.done [#allocation3], 18432
    $region29: #{tpu_custom_call.1} parent=1 // pred_fallthru
      _
    %v38 = vld [vmem:[%s0] sm:$0xff]
    %v39 = vld [vmem:[%s0 + $0x8] sm:$0xff]
    %v40 = vld [vmem:[%s0 + $0x10] sm:$0xff]
    %v41 = vld [vmem:[%s0 + $0x18] sm:$0xff]
    %v42 = vld [vmem:[%s0 + $0x20] sm:$0x1]
    %v43 = vld [vmem:[%s0 + $0x28] sm:$0x1]
    %v44 = vld [vmem:[%s0 + $0x30] sm:$0x1]
    %v45 = vld [vmem:[%s0 + $0x38] sm:$0x1]
    %v46 = vld [vmem:[%s1] sm:$0xff]
    %v47 = vld [vmem:[%s1 + $0x8] sm:$0xff]
    %v48 = vld [vmem:[%s1 + $0x10] sm:$0xff]
    %v49 = vld [vmem:[%s1 + $0x18] sm:$0xff]
    %vm50 = vcmask 72704
    %v52 = vsel %vm50, %v46, 0
    %v55 = vsel %vm50, %v47, 0
    %v58 = vsel %vm50, %v48, 0
    %v61 = vsel %vm50, %v49, 0
    %vm63 = vcmask 1040384
    %v65 = vsel %vm63, %v42, 0
    %v68 = vsel %vm63, %v43, 0
    %v71 = vsel %vm63, %v44, 0
    %v74 = vsel %vm63, %v45, 0
    %76 = vmatprep.subr.mxu0 0.0
    %77 = vmatpush1.msra.mxu0 0.0
    %78 = vmatprep.subr.mxu0 0.0
    %79 = vmatpush1.msra.mxu0 0.0
    %80 = vmatprep.subr.mxu0 0.0
    %81 = vmatpush1.msra.mxu0 0.0
    %82 = vmatprep.subr.mxu0 0.0
    %83 = vmatpush1.msra.mxu0 0.0
    %84 = vmatprep.subr.mxu0 0.0
    %85 = vmatpush1.msra.mxu0 0.0
    %86 = vmatprep.subr.mxu0 0.0
    %87 = vmatpush1.msra.mxu0 0.0
    %88 = vmatprep.subr.mxu0 0.0
    %89 = vmatpush1.msra.mxu0 0.0
    %90 = vmatprep.subr.mxu0 0.0
    %91 = vmatpush1.msra.mxu0 0.0
    %92 = vmatprep.subr.mxu0 0.0
    %93 = vmatpush1.msra.mxu0 0.0
    %94 = vmatprep.subr.mxu0 0.0
    %95 = vmatpush1.msra.mxu0 0.0
    %96 = vmatprep.subr.mxu0 0.0
    %97 = vmatpush1.msra.mxu0 0.0
    %98 = vmatprep.subr.mxu0 0.0
    %99 = vmatpush1.msra.mxu0 0.0
    %100 = vmatprep.subr.mxu0 0.0
    %101 = vmatpush1.msra.mxu0 0.0
    %102 = vmatprep.subr.mxu0 0.0
    %103 = vmatpush1.msra.mxu0 0.0
    %104 = vmatprep.subr.mxu0 %v68
    %105 = vmatpush1.msra.mxu0 %v65
    %106 = vmatprep.subr.mxu0 %v39
    %107 = vmatpush1.msra.mxu0 %v38
    %108 = vmatprep.subr.mxu0 0.0
    %109 = vmatpush2.msra.mxu0 0.0
    %110 = vmatprep.subr.mxu0 0.0
    %111 = vmatpush2.msra.mxu0 0.0
    %112 = vmatprep.subr.mxu0 0.0
    %113 = vmatpush2.msra.mxu0 0.0
    %114 = vmatprep.subr.mxu0 0.0
    %115 = vmatpush2.msra.mxu0 0.0
    %116 = vmatprep.subr.mxu0 0.0
    %117 = vmatpush2.msra.mxu0 0.0
    %118 = vmatprep.subr.mxu0 0.0
    %119 = vmatpush2.msra.mxu0 0.0
    %120 = vmatprep.subr.mxu0 0.0
    %121 = vmatpush2.msra.mxu0 0.0
    %122 = vmatprep.subr.mxu0 0.0
    %123 = vmatpush2.msra.mxu0 0.0
    %124 = vmatprep.subr.mxu0 0.0
    %125 = vmatpush2.msra.mxu0 0.0
    %126 = vmatprep.subr.mxu0 0.0
    %127 = vmatpush2.msra.mxu0 0.0
    %128 = vmatprep.subr.mxu0 0.0
    %129 = vmatpush2.msra.mxu0 0.0
    %130 = vmatprep.subr.mxu0 0.0
    %131 = vmatpush2.msra.mxu0 0.0
    %132 = vmatprep.subr.mxu0 0.0
    %133 = vmatpush2.msra.mxu0 0.0
    %134 = vmatprep.subr.mxu0 0.0
    %135 = vmatpush2.msra.mxu0 0.0
    %136 = vmatprep.subr.mxu0 0.0
    %137 = vmatpush2.msra.mxu0 0.0
    %138 = vmatprep.subr.mxu0 0.0
    %139 = vmatpush2.msra.mxu0 0.0
    %140 = vmatprep.mubr.f32.mxu0 0.0
    %141 = vmatmul.mubr.f32.gmra.mxu0 %v52
    %v142 = vpop.f32.mrf.mxu0
    %v143 = vadd.f32 0.0, %v142
    %v144 = vpop.f32.mrf.mxu0
    %v145 = vadd.f32 0.0, %v144
    %146 = vmatprep.mubr.f32.mxu0 0.0
    %147 = vmatmul.mubr.f32.gmra.mxu0 %v55
    %v148 = vpop.f32.mrf.mxu0
    %v149 = vadd.f32 0.0, %v148
    %v150 = vpop.f32.mrf.mxu0
    %v151 = vadd.f32 0.0, %v150
    %152 = vmatprep.mubr.f32.mxu0 0.0
    %153 = vmatmul.mubr.f32.gmra.mxu0 %v58
    %v154 = vpop.f32.mrf.mxu0
    %v155 = vadd.f32 0.0, %v154
    %v156 = vpop.f32.mrf.mxu0
    %v157 = vadd.f32 0.0, %v156
    %158 = vmatprep.mubr.f32.mxu0 0.0
    %159 = vmatmul.mubr.f32.gmra.mxu0 %v61
    %v160 = vpop.f32.mrf.mxu0
    %v161 = vadd.f32 0.0, %v160
    %v162 = vpop.f32.mrf.mxu0
    %v163 = vadd.f32 0.0, %v162
    %164 = vdwg.mxu0
    %165 = vmatprep.subr.mxu0 0.0
    %166 = vmatpush1.msra.mxu0 0.0
    %167 = vmatprep.subr.mxu0 0.0
    %168 = vmatpush1.msra.mxu0 0.0
    %169 = vmatprep.subr.mxu0 0.0
    %170 = vmatpush1.msra.mxu0 0.0
    %171 = vmatprep.subr.mxu0 0.0
    %172 = vmatpush1.msra.mxu0 0.0
    %173 = vmatprep.subr.mxu0 0.0
    %174 = vmatpush1.msra.mxu0 0.0
    %175 = vmatprep.subr.mxu0 0.0
    %176 = vmatpush1.msra.mxu0 0.0
    %177 = vmatprep.subr.mxu0 0.0
    %178 = vmatpush1.msra.mxu0 0.0
    %179 = vmatprep.subr.mxu0 0.0
    %180 = vmatpush1.msra.mxu0 0.0
    %181 = vmatprep.subr.mxu0 0.0
    %182 = vmatpush1.msra.mxu0 0.0
    %183 = vmatprep.subr.mxu0 0.0
    %184 = vmatpush1.msra.mxu0 0.0
    %185 = vmatprep.subr.mxu0 0.0
    %186 = vmatpush1.msra.mxu0 0.0
    %187 = vmatprep.subr.mxu0 0.0
    %188 = vmatpush1.msra.mxu0 0.0
    %189 = vmatprep.subr.mxu0 0.0
    %190 = vmatpush1.msra.mxu0 0.0
    %191 = vmatprep.subr.mxu0 0.0
    %192 = vmatpush1.msra.mxu0 0.0
    %193 = vmatprep.subr.mxu0 %v74
    %194 = vmatpush1.msra.mxu0 %v71
    %195 = vmatprep.subr.mxu0 %v41
    %196 = vmatpush1.msra.mxu0 %v40
    %197 = vmatprep.subr.mxu0 0.0
    %198 = vmatpush2.msra.mxu0 0.0
    %199 = vmatprep.subr.mxu0 0.0
    %200 = vmatpush2.msra.mxu0 0.0
    %201 = vmatprep.subr.mxu0 0.0
    %202 = vmatpush2.msra.mxu0 0.0
    %203 = vmatprep.subr.mxu0 0.0
    %204 = vmatpush2.msra.mxu0 0.0
    %205 = vmatprep.subr.mxu0 0.0
    %206 = vmatpush2.msra.mxu0 0.0
    %207 = vmatprep.subr.mxu0 0.0
    %208 = vmatpush2.msra.mxu0 0.0
    %209 = vmatprep.subr.mxu0 0.0
    %210 = vmatpush2.msra.mxu0 0.0
    %211 = vmatprep.subr.mxu0 0.0
    %212 = vmatpush2.msra.mxu0 0.0
    %213 = vmatprep.subr.mxu0 0.0
    %214 = vmatpush2.msra.mxu0 0.0
    %215 = vmatprep.subr.mxu0 0.0
    %216 = vmatpush2.msra.mxu0 0.0
    %217 = vmatprep.subr.mxu0 0.0
    %218 = vmatpush2.msra.mxu0 0.0
    %219 = vmatprep.subr.mxu0 0.0
    %220 = vmatpush2.msra.mxu0 0.0
    %221 = vmatprep.subr.mxu0 0.0
    %222 = vmatpush2.msra.mxu0 0.0
    %223 = vmatprep.subr.mxu0 0.0
    %224 = vmatpush2.msra.mxu0 0.0
    %225 = vmatprep.subr.mxu0 0.0
    %226 = vmatpush2.msra.mxu0 0.0
    %227 = vmatprep.subr.mxu0 0.0
    %228 = vmatpush2.msra.mxu0 0.0
    %229 = vmatprep.mubr.f32.mxu0 0.0
    %230 = vmatmul.mubr.f32.gmra.mxu0 %v52
    %v231 = vpop.f32.mrf.mxu0
    %v232 = vadd.f32 0.0, %v231
    %v233 = vpop.f32.mrf.mxu0
    %v234 = vadd.f32 0.0, %v233
    %235 = vmatprep.mubr.f32.mxu0 0.0
    %236 = vmatmul.mubr.f32.gmra.mxu0 %v55
    %v237 = vpop.f32.mrf.mxu0
    %v238 = vadd.f32 0.0, %v237
    %v239 = vpop.f32.mrf.mxu0
    %v240 = vadd.f32 0.0, %v239
    %241 = vmatprep.mubr.f32.mxu0 0.0
    %242 = vmatmul.mubr.f32.gmra.mxu0 %v58
    %v243 = vpop.f32.mrf.mxu0
    %v244 = vadd.f32 0.0, %v243
    %v245 = vpop.f32.mrf.mxu0
    %v246 = vadd.f32 0.0, %v245
    %247 = vmatprep.mubr.f32.mxu0 0.0
    %248 = vmatmul.mubr.f32.gmra.mxu0 %v61
    %v249 = vpop.f32.mrf.mxu0
    %v250 = vadd.f32 0.0, %v249
    %v251 = vpop.f32.mrf.mxu0
    %v252 = vadd.f32 0.0, %v251
    %253 = vdwg.mxu0
    %v254 = vmax.f32 %v143, 0.0
    %v255 = vmax.f32 %v145, 0.0
    %v256 = vmax.f32 %v232, 0.0
    %v257 = vmax.f32 %v234, 0.0
    %v258 = vmax.f32 %v149, 0.0
    %v259 = vmax.f32 %v151, 0.0
    %v260 = vmax.f32 %v238, 0.0
    %v261 = vmax.f32 %v240, 0.0
    %v262 = vmax.f32 %v155, 0.0
    %v263 = vmax.f32 %v157, 0.0
    %v264 = vmax.f32 %v244, 0.0
    %v265 = vmax.f32 %v246, 0.0
    %v266 = vmax.f32 %v161, 0.0
    %v267 = vmax.f32 %v163, 0.0
    %v268 = vmax.f32 %v250, 0.0
    %v269 = vmax.f32 %v252, 0.0
    %270 = vrot.lane.b32.xlu0 %v254, 17
    %v271 = vpop.permute.xlu0 %270
    %272 = vrot.lane.b32.xlu0 %v258, 17
    %v273 = vpop.permute.xlu0 %272
    %274 = vrot.lane.b32.xlu0 %v262, 17
    %v275 = vpop.permute.xlu0 %274
    %276 = vrot.lane.b32.xlu0 %v266, 17
    %v277 = vpop.permute.xlu0 %276
    %278 = vrot.lane.b32.xlu0 %v255, 17
    %v279 = vpop.permute.xlu0 %278
    %280 = vrot.lane.b32.xlu0 %v259, 17
    %v281 = vpop.permute.xlu0 %280
    %282 = vrot.lane.b32.xlu0 %v263, 17
    %v283 = vpop.permute.xlu0 %282
    %284 = vrot.lane.b32.xlu0 %v267, 17
    %v285 = vpop.permute.xlu0 %284
    %286 = vrot.lane.b32.xlu0 %v256, 17
    %v287 = vpop.permute.xlu0 %286
    %288 = vrot.lane.b32.xlu0 %v260, 17
    %v289 = vpop.permute.xlu0 %288
    %290 = vrot.lane.b32.xlu0 %v264, 17
    %v291 = vpop.permute.xlu0 %290
    %292 = vrot.lane.b32.xlu0 %v268, 17
    %v293 = vpop.permute.xlu0 %292
    %294 = vrot.lane.b32.xlu0 %v257, 17
    %v295 = vpop.permute.xlu0 %294
    %296 = vrot.lane.b32.xlu0 %v261, 17
    %v297 = vpop.permute.xlu0 %296
    %298 = vrot.lane.b32.xlu0 %v265, 17
    %v299 = vpop.permute.xlu0 %298
    %300 = vrot.lane.b32.xlu0 %v269, 17
    %v301 = vpop.permute.xlu0 %300
    %v302 = vlaneseq
    %v303 = vand.u32 %v302, 127
    %vm304 = vcmp.lt.s32.totalorder %v303, 17
    %v305 = vsel %vm304, %v287, %v295
    %v306 = vsel %vm304, %v289, %v297
    %v307 = vsel %vm304, %v291, %v299
    %v308 = vsel %vm304, %v293, %v301
    %v309 = vsel %vm304, %v279, %v287
    %v310 = vsel %vm304, %v281, %v289
    %v311 = vsel %vm304, %v283, %v291
    %v312 = vsel %vm304, %v285, %v293
    %v313 = vsel %vm304, %v271, %v279
    %v314 = vsel %vm304, %v273, %v281
    %v315 = vsel %vm304, %v275, %v283
    %v316 = vsel %vm304, %v277, %v285
    %v317 = vsel %vm304, %v295, %v271
    %v318 = vsel %vm304, %v297, %v273
    %v319 = vsel %vm304, %v299, %v275
    %v320 = vsel %vm304, %v301, %v277
    %v321 = vld [vmem:[#allocation2] sm:$0xff]
    %v322 = vld [vmem:[#allocation2 + $0x8] sm:$0xff]
    %v323 = vld [vmem:[#allocation2 + $0x10] sm:$0xff]
    %v324 = vld [vmem:[#allocation2 + $0x18] sm:$0xff]
    %v325 = vld [vmem:[#allocation2 + $0x20] sm:$0xff]
    %v326 = vld [vmem:[#allocation2 + $0x28] sm:$0xff]
    %v327 = vld [vmem:[#allocation2 + $0x30] sm:$0xff]
    %v328 = vld [vmem:[#allocation2 + $0x38] sm:$0xff]
    %v329 = vld [vmem:[#allocation2 + $0x40] sm:$0xff]
    %v330 = vld [vmem:[#allocation2 + $0x48] sm:$0xff]
    %v331 = vld [vmem:[#allocation2 + $0x50] sm:$0xff]
    %v332 = vld [vmem:[#allocation2 + $0x58] sm:$0xff]
    %v333 = vld [vmem:[#allocation2 + $0x60] sm:$0xff]
    %v334 = vld [vmem:[#allocation2 + $0x68] sm:$0xff]
    %v335 = vld [vmem:[#allocation2 + $0x70] sm:$0xff]
    %v336 = vld [vmem:[#allocation2 + $0x78] sm:$0xff]
    %v337 = vmul.f32 %v317, %v321
    %v338 = vmul.f32 %v313, %v322
    %v339 = vmul.f32 %v309, %v323
    %v340 = vmul.f32 %v305, %v324
    %v341 = vmul.f32 %v318, %v325
    %v342 = vmul.f32 %v314, %v326
    %v343 = vmul.f32 %v310, %v327
    %v344 = vmul.f32 %v306, %v328
    %v345 = vmul.f32 %v319, %v329
    %v346 = vmul.f32 %v315, %v330
    %v347 = vmul.f32 %v311, %v331
    %v348 = vmul.f32 %v307, %v332
    %v349 = vmul.f32 %v320, %v333
    %v350 = vmul.f32 %v316, %v334
    %v351 = vmul.f32 %v312, %v335
    %v352 = vmul.f32 %v308, %v336
    %353 = vrot.lane.b32.xlu0 %v254, 16
    %v354 = vpop.permute.xlu0 %353
    %355 = vrot.lane.b32.xlu0 %v258, 16
    %v356 = vpop.permute.xlu0 %355
    %357 = vrot.lane.b32.xlu0 %v262, 16
    %v358 = vpop.permute.xlu0 %357
    %359 = vrot.lane.b32.xlu0 %v266, 16
    %v360 = vpop.permute.xlu0 %359
    %361 = vrot.lane.b32.xlu0 %v255, 16
    %v362 = vpop.permute.xlu0 %361
    %363 = vrot.lane.b32.xlu0 %v259, 16
    %v364 = vpop.permute.xlu0 %363
    %365 = vrot.lane.b32.xlu0 %v263, 16
    %v366 = vpop.permute.xlu0 %365
    %367 = vrot.lane.b32.xlu0 %v267, 16
    %v368 = vpop.permute.xlu0 %367
    %369 = vrot.lane.b32.xlu0 %v256, 16
    %v370 = vpop.permute.xlu0 %369
    %371 = vrot.lane.b32.xlu0 %v260, 16
    %v372 = vpop.permute.xlu0 %371
    %373 = vrot.lane.b32.xlu0 %v264, 16
    %v374 = vpop.permute.xlu0 %373
    %375 = vrot.lane.b32.xlu0 %v268, 16
    %v376 = vpop.permute.xlu0 %375
    %377 = vrot.lane.b32.xlu0 %v257, 16
    %v378 = vpop.permute.xlu0 %377
    %379 = vrot.lane.b32.xlu0 %v261, 16
    %v380 = vpop.permute.xlu0 %379
    %381 = vrot.lane.b32.xlu0 %v265, 16
    %v382 = vpop.permute.xlu0 %381
    %383 = vrot.lane.b32.xlu0 %v269, 16
    %v384 = vpop.permute.xlu0 %383
    %vm385 = vcmp.lt.s32.totalorder %v303, 16
    %v386 = vsel %vm385, %v370, %v378
    %v387 = vsel %vm385, %v372, %v380
    %v388 = vsel %vm385, %v374, %v382
    %v389 = vsel %vm385, %v376, %v384
    %v390 = vsel %vm385, %v362, %v370
    %v391 = vsel %vm385, %v364, %v372
    %v392 = vsel %vm385, %v366, %v374
    %v393 = vsel %vm385, %v368, %v376
    %v394 = vsel %vm385, %v354, %v362
    %v395 = vsel %vm385, %v356, %v364
    %v396 = vsel %vm385, %v358, %v366
    %v397 = vsel %vm385, %v360, %v368
    %v398 = vsel %vm385, %v378, %v354
    %v399 = vsel %vm385, %v380, %v356
    %v400 = vsel %vm385, %v382, %v358
    %v401 = vsel %vm385, %v384, %v360
    %s402 = scalar_lea.vmem [#allocation2], 128
    %v403 = vld [vmem:[%s402] sm:$0xff]
    %v404 = vld [vmem:[%s402 + $0x8] sm:$0xff]
    %v405 = vld [vmem:[%s402 + $0x10] sm:$0xff]
    %v406 = vld [vmem:[%s402 + $0x18] sm:$0xff]
    %v407 = vld [vmem:[%s402 + $0x20] sm:$0xff]
    %v408 = vld [vmem:[%s402 + $0x28] sm:$0xff]
    %v409 = vld [vmem:[%s402 + $0x30] sm:$0xff]
    %v410 = vld [vmem:[%s402 + $0x38] sm:$0xff]
    %v411 = vld [vmem:[%s402 + $0x40] sm:$0xff]
    %v412 = vld [vmem:[%s402 + $0x48] sm:$0xff]
    %v413 = vld [vmem:[%s402 + $0x50] sm:$0xff]
    %v414 = vld [vmem:[%s402 + $0x58] sm:$0xff]
    %v415 = vld [vmem:[%s402 + $0x60] sm:$0xff]
    %v416 = vld [vmem:[%s402 + $0x68] sm:$0xff]
    %v417 = vld [vmem:[%s402 + $0x70] sm:$0xff]
    %v418 = vld [vmem:[%s402 + $0x78] sm:$0xff]
    %v419 = vmul.f32 %v398, %v403
    %v420 = vmul.f32 %v394, %v404
    %v421 = vmul.f32 %v390, %v405
    %v422 = vmul.f32 %v386, %v406
    %v423 = vmul.f32 %v399, %v407
    %v424 = vmul.f32 %v395, %v408
    %v425 = vmul.f32 %v391, %v409
    %v426 = vmul.f32 %v387, %v410
    %v427 = vmul.f32 %v400, %v411
    %v428 = vmul.f32 %v396, %v412
    %v429 = vmul.f32 %v392, %v413
    %v430 = vmul.f32 %v388, %v414
    %v431 = vmul.f32 %v401, %v415
    %v432 = vmul.f32 %v397, %v416
    %v433 = vmul.f32 %v393, %v417
    %v434 = vmul.f32 %v389, %v418
    %v435 = vadd.f32 %v337, %v419
    %v436 = vadd.f32 %v338, %v420
    %v437 = vadd.f32 %v339, %v421
    %v438 = vadd.f32 %v340, %v422
    %v439 = vadd.f32 %v341, %v423
    %v440 = vadd.f32 %v342, %v424
    %v441 = vadd.f32 %v343, %v425
    %v442 = vadd.f32 %v344, %v426
    %v443 = vadd.f32 %v345, %v427
    %v444 = vadd.f32 %v346, %v428
    %v445 = vadd.f32 %v347, %v429
    %v446 = vadd.f32 %v348, %v430
    %v447 = vadd.f32 %v349, %v431
    %v448 = vadd.f32 %v350, %v432
    %v449 = vadd.f32 %v351, %v433
    %v450 = vadd.f32 %v352, %v434
    %451 = vrot.lane.b32.xlu0 %v254, 15
    %v452 = vpop.permute.xlu0 %451
    %453 = vrot.lane.b32.xlu0 %v258, 15
    %v454 = vpop.permute.xlu0 %453
    %455 = vrot.lane.b32.xlu0 %v262, 15
    %v456 = vpop.permute.xlu0 %455
    %457 = vrot.lane.b32.xlu0 %v266, 15
    %v458 = vpop.permute.xlu0 %457
    %459 = vrot.lane.b32.xlu0 %v255, 15
    %v460 = vpop.permute.xlu0 %459
    %461 = vrot.lane.b32.xlu0 %v259, 15
    %v462 = vpop.permute.xlu0 %461
    %463 = vrot.lane.b32.xlu0 %v263, 15
    %v464 = vpop.permute.xlu0 %463
    %465 = vrot.lane.b32.xlu0 %v267, 15
    %v466 = vpop.permute.xlu0 %465
    %467 = vrot.lane.b32.xlu0 %v256, 15
    %v468 = vpop.permute.xlu0 %467
    %469 = vrot.lane.b32.xlu0 %v260, 15
    %v470 = vpop.permute.xlu0 %469
    %471 = vrot.lane.b32.xlu0 %v264, 15
    %v472 = vpop.permute.xlu0 %471
    %473 = vrot.lane.b32.xlu0 %v268, 15
    %v474 = vpop.permute.xlu0 %473
    %475 = vrot.lane.b32.xlu0 %v257, 15
    %v476 = vpop.permute.xlu0 %475
    %477 = vrot.lane.b32.xlu0 %v261, 15
    %v478 = vpop.permute.xlu0 %477
    %479 = vrot.lane.b32.xlu0 %v265, 15
    %v480 = vpop.permute.xlu0 %479
    %481 = vrot.lane.b32.xlu0 %v269, 15
    %v482 = vpop.permute.xlu0 %481
    %vm483 = vcmp.lt.s32.totalorder %v303, 15
    %v484 = vsel %vm483, %v468, %v476
    %v485 = vsel %vm483, %v470, %v478
    %v486 = vsel %vm483, %v472, %v480
    %v487 = vsel %vm483, %v474, %v482
    %v488 = vsel %vm483, %v460, %v468
    %v489 = vsel %vm483, %v462, %v470
    %v490 = vsel %vm483, %v464, %v472
    %v491 = vsel %vm483, %v466, %v474
    %v492 = vsel %vm483, %v452, %v460
    %v493 = vsel %vm483, %v454, %v462
    %v494 = vsel %vm483, %v456, %v464
    %v495 = vsel %vm483, %v458, %v466
    %v496 = vsel %vm483, %v476, %v452
    %v497 = vsel %vm483, %v478, %v454
    %v498 = vsel %vm483, %v480, %v456
    %v499 = vsel %vm483, %v482, %v458
    %s500 = scalar_lea.vmem [#allocation2], 256
    %v501 = vld [vmem:[%s500] sm:$0xff]
    %v502 = vld [vmem:[%s500 + $0x8] sm:$0xff]
    %v503 = vld [vmem:[%s500 + $0x10] sm:$0xff]
    %v504 = vld [vmem:[%s500 + $0x18] sm:$0xff]
    %v505 = vld [vmem:[%s500 + $0x20] sm:$0xff]
    %v506 = vld [vmem:[%s500 + $0x28] sm:$0xff]
    %v507 = vld [vmem:[%s500 + $0x30] sm:$0xff]
    %v508 = vld [vmem:[%s500 + $0x38] sm:$0xff]
    %v509 = vld [vmem:[%s500 + $0x40] sm:$0xff]
    %v510 = vld [vmem:[%s500 + $0x48] sm:$0xff]
    %v511 = vld [vmem:[%s500 + $0x50] sm:$0xff]
    %v512 = vld [vmem:[%s500 + $0x58] sm:$0xff]
    %v513 = vld [vmem:[%s500 + $0x60] sm:$0xff]
    %v514 = vld [vmem:[%s500 + $0x68] sm:$0xff]
    %v515 = vld [vmem:[%s500 + $0x70] sm:$0xff]
    %v516 = vld [vmem:[%s500 + $0x78] sm:$0xff]
    %v517 = vmul.f32 %v496, %v501
    %v518 = vmul.f32 %v492, %v502
    %v519 = vmul.f32 %v488, %v503
    %v520 = vmul.f32 %v484, %v504
    %v521 = vmul.f32 %v497, %v505
    %v522 = vmul.f32 %v493, %v506
    %v523 = vmul.f32 %v489, %v507
    %v524 = vmul.f32 %v485, %v508
    %v525 = vmul.f32 %v498, %v509
    %v526 = vmul.f32 %v494, %v510
    %v527 = vmul.f32 %v490, %v511
    %v528 = vmul.f32 %v486, %v512
    %v529 = vmul.f32 %v499, %v513
    %v530 = vmul.f32 %v495, %v514
    %v531 = vmul.f32 %v491, %v515
    %v532 = vmul.f32 %v487, %v516
    %v533 = vadd.f32 %v435, %v517
    %v534 = vadd.f32 %v436, %v518
    %v535 = vadd.f32 %v437, %v519
    %v536 = vadd.f32 %v438, %v520
    %v537 = vadd.f32 %v439, %v521
    %v538 = vadd.f32 %v440, %v522
    %v539 = vadd.f32 %v441, %v523
    %v540 = vadd.f32 %v442, %v524
    %v541 = vadd.f32 %v443, %v525
    %v542 = vadd.f32 %v444, %v526
    %v543 = vadd.f32 %v445, %v527
    %v544 = vadd.f32 %v446, %v528
    %v545 = vadd.f32 %v447, %v529
    %v546 = vadd.f32 %v448, %v530
    %v547 = vadd.f32 %v449, %v531
    %v548 = vadd.f32 %v450, %v532
    %549 = vrot.lane.b32.xlu0 %v254, 1
    %v550 = vpop.permute.xlu0 %549
    %551 = vrot.lane.b32.xlu0 %v258, 1
    %v552 = vpop.permute.xlu0 %551
    %553 = vrot.lane.b32.xlu0 %v262, 1
    %v554 = vpop.permute.xlu0 %553
    %555 = vrot.lane.b32.xlu0 %v266, 1
    %v556 = vpop.permute.xlu0 %555
    %557 = vrot.lane.b32.xlu0 %v255, 1
    %v558 = vpop.permute.xlu0 %557
    %559 = vrot.lane.b32.xlu0 %v259, 1
    %v560 = vpop.permute.xlu0 %559
    %561 = vrot.lane.b32.xlu0 %v263, 1
    %v562 = vpop.permute.xlu0 %561
    %563 = vrot.lane.b32.xlu0 %v267, 1
    %v564 = vpop.permute.xlu0 %563
    %565 = vrot.lane.b32.xlu0 %v256, 1
    %v566 = vpop.permute.xlu0 %565
    %567 = vrot.lane.b32.xlu0 %v260, 1
    %v568 = vpop.permute.xlu0 %567
    %569 = vrot.lane.b32.xlu0 %v264, 1
    %v570 = vpop.permute.xlu0 %569
    %571 = vrot.lane.b32.xlu0 %v268, 1
    %v572 = vpop.permute.xlu0 %571
    %573 = vrot.lane.b32.xlu0 %v257, 1
    %v574 = vpop.permute.xlu0 %573
    %575 = vrot.lane.b32.xlu0 %v261, 1
    %v576 = vpop.permute.xlu0 %575
    %577 = vrot.lane.b32.xlu0 %v265, 1
    %v578 = vpop.permute.xlu0 %577
    %579 = vrot.lane.b32.xlu0 %v269, 1
    %v580 = vpop.permute.xlu0 %579
    %vm581 = vcmp.lt.s32.totalorder %v303, 1
    %v582 = vsel %vm581, %v566, %v574
    %v583 = vsel %vm581, %v568, %v576
    %v584 = vsel %vm581, %v570, %v578
    %v585 = vsel %vm581, %v572, %v580
    %v586 = vsel %vm581, %v558, %v566
    %v587 = vsel %vm581, %v560, %v568
    %v588 = vsel %vm581, %v562, %v570
    %v589 = vsel %vm581, %v564, %v572
    %v590 = vsel %vm581, %v550, %v558
    %v591 = vsel %vm581, %v552, %v560
    %v592 = vsel %vm581, %v554, %v562
    %v593 = vsel %vm581, %v556, %v564
    %v594 = vsel %vm581, %v574, %v550
    %v595 = vsel %vm581, %v576, %v552
    %v596 = vsel %vm581, %v578, %v554
    %v597 = vsel %vm581, %v580, %v556
    %s598 = scalar_lea.vmem [#allocation2], 384
    %v599 = vld [vmem:[%s598] sm:$0xff]
    %v600 = vld [vmem:[%s598 + $0x8] sm:$0xff]
    %v601 = vld [vmem:[%s598 + $0x10] sm:$0xff]
    %v602 = vld [vmem:[%s598 + $0x18] sm:$0xff]
    %v603 = vld [vmem:[%s598 + $0x20] sm:$0xff]
    %v604 = vld [vmem:[%s598 + $0x28] sm:$0xff]
    %v605 = vld [vmem:[%s598 + $0x30] sm:$0xff]
    %v606 = vld [vmem:[%s598 + $0x38] sm:$0xff]
    %v607 = vld [vmem:[%s598 + $0x40] sm:$0xff]
    %v608 = vld [vmem:[%s598 + $0x48] sm:$0xff]
    %v609 = vld [vmem:[%s598 + $0x50] sm:$0xff]
    %v610 = vld [vmem:[%s598 + $0x58] sm:$0xff]
    %v611 = vld [vmem:[%s598 + $0x60] sm:$0xff]
    %v612 = vld [vmem:[%s598 + $0x68] sm:$0xff]
    %v613 = vld [vmem:[%s598 + $0x70] sm:$0xff]
    %v614 = vld [vmem:[%s598 + $0x78] sm:$0xff]
    %v615 = vmul.f32 %v594, %v599
    %v616 = vmul.f32 %v590, %v600
    %v617 = vmul.f32 %v586, %v601
    %v618 = vmul.f32 %v582, %v602
    %v619 = vmul.f32 %v595, %v603
    %v620 = vmul.f32 %v591, %v604
    %v621 = vmul.f32 %v587, %v605
    %v622 = vmul.f32 %v583, %v606
    %v623 = vmul.f32 %v596, %v607
    %v624 = vmul.f32 %v592, %v608
    %v625 = vmul.f32 %v588, %v609
    %v626 = vmul.f32 %v584, %v610
    %v627 = vmul.f32 %v597, %v611
    %v628 = vmul.f32 %v593, %v612
    %v629 = vmul.f32 %v589, %v613
    %v630 = vmul.f32 %v585, %v614
    %v631 = vadd.f32 %v533, %v615
    %v632 = vadd.f32 %v534, %v616
    %v633 = vadd.f32 %v535, %v617
    %v634 = vadd.f32 %v536, %v618
    %v635 = vadd.f32 %v537, %v619
    %v636 = vadd.f32 %v538, %v620
    %v637 = vadd.f32 %v539, %v621
    %v638 = vadd.f32 %v540, %v622
    %v639 = vadd.f32 %v541, %v623
    %v640 = vadd.f32 %v542, %v624
    %v641 = vadd.f32 %v543, %v625
    %v642 = vadd.f32 %v544, %v626
    %v643 = vadd.f32 %v545, %v627
    %v644 = vadd.f32 %v546, %v628
    %v645 = vadd.f32 %v547, %v629
    %v646 = vadd.f32 %v548, %v630
    %s647 = scalar_lea.vmem [#allocation2], 512
    %v648 = vld [vmem:[%s647] sm:$0xff]
    %v649 = vld [vmem:[%s647 + $0x8] sm:$0xff]
    %v650 = vld [vmem:[%s647 + $0x10] sm:$0xff]
    %v651 = vld [vmem:[%s647 + $0x18] sm:$0xff]
    %v652 = vld [vmem:[%s647 + $0x20] sm:$0xff]
    %v653 = vld [vmem:[%s647 + $0x28] sm:$0xff]
    %v654 = vld [vmem:[%s647 + $0x30] sm:$0xff]
    %v655 = vld [vmem:[%s647 + $0x38] sm:$0xff]
    %v656 = vld [vmem:[%s647 + $0x40] sm:$0xff]
    %v657 = vld [vmem:[%s647 + $0x48] sm:$0xff]
    %v658 = vld [vmem:[%s647 + $0x50] sm:$0xff]
    %v659 = vld [vmem:[%s647 + $0x58] sm:$0xff]
    %v660 = vld [vmem:[%s647 + $0x60] sm:$0xff]
    %v661 = vld [vmem:[%s647 + $0x68] sm:$0xff]
    %v662 = vld [vmem:[%s647 + $0x70] sm:$0xff]
    %v663 = vld [vmem:[%s647 + $0x78] sm:$0xff]
    %v664 = vmul.f32 %v254, %v648
    %v665 = vmul.f32 %v255, %v649
    %v666 = vmul.f32 %v256, %v650
    %v667 = vmul.f32 %v257, %v651
    %v668 = vmul.f32 %v258, %v652
    %v669 = vmul.f32 %v259, %v653
    %v670 = vmul.f32 %v260, %v654
    %v671 = vmul.f32 %v261, %v655
    %v672 = vmul.f32 %v262, %v656
    %v673 = vmul.f32 %v263, %v657
    %v674 = vmul.f32 %v264, %v658
    %v675 = vmul.f32 %v265, %v659
    %v676 = vmul.f32 %v266, %v660
    %v677 = vmul.f32 %v267, %v661
    %v678 = vmul.f32 %v268, %v662
    %v679 = vmul.f32 %v269, %v663
    %v680 = vadd.f32 %v631, %v664
    %v681 = vadd.f32 %v632, %v665
    %v682 = vadd.f32 %v633, %v666
    %v683 = vadd.f32 %v634, %v667
    %v684 = vadd.f32 %v635, %v668
    %v685 = vadd.f32 %v636, %v669
    %v686 = vadd.f32 %v637, %v670
    %v687 = vadd.f32 %v638, %v671
    %v688 = vadd.f32 %v639, %v672
    %v689 = vadd.f32 %v640, %v673
    %v690 = vadd.f32 %v641, %v674
    %v691 = vadd.f32 %v642, %v675
    %v692 = vadd.f32 %v643, %v676
    %v693 = vadd.f32 %v644, %v677
    %v694 = vadd.f32 %v645, %v678
    %v695 = vadd.f32 %v646, %v679
    %696 = vrot.lane.b32.xlu0 %v254, 127
    %v697 = vpop.permute.xlu0 %696
    %698 = vrot.lane.b32.xlu0 %v258, 127
    %v699 = vpop.permute.xlu0 %698
    %700 = vrot.lane.b32.xlu0 %v262, 127
    %v701 = vpop.permute.xlu0 %700
    %702 = vrot.lane.b32.xlu0 %v266, 127
    %v703 = vpop.permute.xlu0 %702
    %704 = vrot.lane.b32.xlu0 %v255, 127
    %v705 = vpop.permute.xlu0 %704
    %706 = vrot.lane.b32.xlu0 %v259, 127
    %v707 = vpop.permute.xlu0 %706
    %708 = vrot.lane.b32.xlu0 %v263, 127
    %v709 = vpop.permute.xlu0 %708
    %710 = vrot.lane.b32.xlu0 %v267, 127
    %v711 = vpop.permute.xlu0 %710
    %712 = vrot.lane.b32.xlu0 %v256, 127
    %v713 = vpop.permute.xlu0 %712
    %714 = vrot.lane.b32.xlu0 %v260, 127
    %v715 = vpop.permute.xlu0 %714
    %716 = vrot.lane.b32.xlu0 %v264, 127
    %v717 = vpop.permute.xlu0 %716
    %718 = vrot.lane.b32.xlu0 %v268, 127
    %v719 = vpop.permute.xlu0 %718
    %720 = vrot.lane.b32.xlu0 %v257, 127
    %v721 = vpop.permute.xlu0 %720
    %722 = vrot.lane.b32.xlu0 %v261, 127
    %v723 = vpop.permute.xlu0 %722
    %724 = vrot.lane.b32.xlu0 %v265, 127
    %v725 = vpop.permute.xlu0 %724
    %726 = vrot.lane.b32.xlu0 %v269, 127
    %v727 = vpop.permute.xlu0 %726
    %vm728 = vcmp.lt.s32.totalorder %v303, 127
    %v729 = vsel %vm728, %v713, %v721
    %v730 = vsel %vm728, %v715, %v723
    %v731 = vsel %vm728, %v717, %v725
    %v732 = vsel %vm728, %v719, %v727
    %v733 = vsel %vm728, %v705, %v713
    %v734 = vsel %vm728, %v707, %v715
    %v735 = vsel %vm728, %v709, %v717
    %v736 = vsel %vm728, %v711, %v719
    %v737 = vsel %vm728, %v697, %v705
    %v738 = vsel %vm728, %v699, %v707
    %v739 = vsel %vm728, %v701, %v709
    %v740 = vsel %vm728, %v703, %v711
    %v741 = vsel %vm728, %v721, %v697
    %v742 = vsel %vm728, %v723, %v699
    %v743 = vsel %vm728, %v725, %v701
    %v744 = vsel %vm728, %v727, %v703
    %s745 = scalar_lea.vmem [#allocation2], 640
    %v746 = vld [vmem:[%s745] sm:$0xff]
    %v747 = vld [vmem:[%s745 + $0x8] sm:$0xff]
    %v748 = vld [vmem:[%s745 + $0x10] sm:$0xff]
    %v749 = vld [vmem:[%s745 + $0x18] sm:$0xff]
    %v750 = vld [vmem:[%s745 + $0x20] sm:$0xff]
    %v751 = vld [vmem:[%s745 + $0x28] sm:$0xff]
    %v752 = vld [vmem:[%s745 + $0x30] sm:$0xff]
    %v753 = vld [vmem:[%s745 + $0x38] sm:$0xff]
    %v754 = vld [vmem:[%s745 + $0x40] sm:$0xff]
    %v755 = vld [vmem:[%s745 + $0x48] sm:$0xff]
    %v756 = vld [vmem:[%s745 + $0x50] sm:$0xff]
    %v757 = vld [vmem:[%s745 + $0x58] sm:$0xff]
    %v758 = vld [vmem:[%s745 + $0x60] sm:$0xff]
    %v759 = vld [vmem:[%s745 + $0x68] sm:$0xff]
    %v760 = vld [vmem:[%s745 + $0x70] sm:$0xff]
    %v761 = vld [vmem:[%s745 + $0x78] sm:$0xff]
    %v762 = vmul.f32 %v737, %v746
    %v763 = vmul.f32 %v733, %v747
    %v764 = vmul.f32 %v729, %v748
    %v765 = vmul.f32 %v741, %v749
    %v766 = vmul.f32 %v738, %v750
    %v767 = vmul.f32 %v734, %v751
    %v768 = vmul.f32 %v730, %v752
    %v769 = vmul.f32 %v742, %v753
    %v770 = vmul.f32 %v739, %v754
    %v771 = vmul.f32 %v735, %v755
    %v772 = vmul.f32 %v731, %v756
    %v773 = vmul.f32 %v743, %v757
    %v774 = vmul.f32 %v740, %v758
    %v775 = vmul.f32 %v736, %v759
    %v776 = vmul.f32 %v732, %v760
    %v777 = vmul.f32 %v744, %v761
    %v778 = vadd.f32 %v680, %v762
    %v779 = vadd.f32 %v681, %v763
    %v780 = vadd.f32 %v682, %v764
    %v781 = vadd.f32 %v683, %v765
    %v782 = vadd.f32 %v684, %v766
    %v783 = vadd.f32 %v685, %v767
    %v784 = vadd.f32 %v686, %v768
    %v785 = vadd.f32 %v687, %v769
    %v786 = vadd.f32 %v688, %v770
    %v787 = vadd.f32 %v689, %v771
    %v788 = vadd.f32 %v690, %v772
    %v789 = vadd.f32 %v691, %v773
    %v790 = vadd.f32 %v692, %v774
    %v791 = vadd.f32 %v693, %v775
    %v792 = vadd.f32 %v694, %v776
    %v793 = vadd.f32 %v695, %v777
    %794 = vrot.lane.b32.xlu0 %v254, 113
    %v795 = vpop.permute.xlu0 %794
    %796 = vrot.lane.b32.xlu0 %v258, 113
    %v797 = vpop.permute.xlu0 %796
    %798 = vrot.lane.b32.xlu0 %v262, 113
    %v799 = vpop.permute.xlu0 %798
    %800 = vrot.lane.b32.xlu0 %v266, 113
    %v801 = vpop.permute.xlu0 %800
    %802 = vrot.lane.b32.xlu0 %v255, 113
    %v803 = vpop.permute.xlu0 %802
    %804 = vrot.lane.b32.xlu0 %v259, 113
    %v805 = vpop.permute.xlu0 %804
    %806 = vrot.lane.b32.xlu0 %v263, 113
    %v807 = vpop.permute.xlu0 %806
    %808 = vrot.lane.b32.xlu0 %v267, 113
    %v809 = vpop.permute.xlu0 %808
    %810 = vrot.lane.b32.xlu0 %v256, 113
    %v811 = vpop.permute.xlu0 %810
    %812 = vrot.lane.b32.xlu0 %v260, 113
    %v813 = vpop.permute.xlu0 %812
    %814 = vrot.lane.b32.xlu0 %v264, 113
    %v815 = vpop.permute.xlu0 %814
    %816 = vrot.lane.b32.xlu0 %v268, 113
    %v817 = vpop.permute.xlu0 %816
    %818 = vrot.lane.b32.xlu0 %v257, 113
    %v819 = vpop.permute.xlu0 %818
    %820 = vrot.lane.b32.xlu0 %v261, 113
    %v821 = vpop.permute.xlu0 %820
    %822 = vrot.lane.b32.xlu0 %v265, 113
    %v823 = vpop.permute.xlu0 %822
    %824 = vrot.lane.b32.xlu0 %v269, 113
    %v825 = vpop.permute.xlu0 %824
    %vm826 = vcmp.lt.s32.totalorder %v303, 113
    %v827 = vsel %vm826, %v811, %v819
    %v828 = vsel %vm826, %v813, %v821
    %v829 = vsel %vm826, %v815, %v823
    %v830 = vsel %vm826, %v817, %v825
    %v831 = vsel %vm826, %v803, %v811
    %v832 = vsel %vm826, %v805, %v813
    %v833 = vsel %vm826, %v807, %v815
    %v834 = vsel %vm826, %v809, %v817
    %v835 = vsel %vm826, %v795, %v803
    %v836 = vsel %vm826, %v797, %v805
    %v837 = vsel %vm826, %v799, %v807
    %v838 = vsel %vm826, %v801, %v809
    %v839 = vsel %vm826, %v819, %v795
    %v840 = vsel %vm826, %v821, %v797
    %v841 = vsel %vm826, %v823, %v799
    %v842 = vsel %vm826, %v825, %v801
    %s843 = scalar_lea.vmem [#allocation2], 768
    %v844 = vld [vmem:[%s843] sm:$0xff]
    %v845 = vld [vmem:[%s843 + $0x8] sm:$0xff]
    %v846 = vld [vmem:[%s843 + $0x10] sm:$0xff]
    %v847 = vld [vmem:[%s843 + $0x18] sm:$0xff]
    %v848 = vld [vmem:[%s843 + $0x20] sm:$0xff]
    %v849 = vld [vmem:[%s843 + $0x28] sm:$0xff]
    %v850 = vld [vmem:[%s843 + $0x30] sm:$0xff]
    %v851 = vld [vmem:[%s843 + $0x38] sm:$0xff]
    %v852 = vld [vmem:[%s843 + $0x40] sm:$0xff]
    %v853 = vld [vmem:[%s843 + $0x48] sm:$0xff]
    %v854 = vld [vmem:[%s843 + $0x50] sm:$0xff]
    %v855 = vld [vmem:[%s843 + $0x58] sm:$0xff]
    %v856 = vld [vmem:[%s843 + $0x60] sm:$0xff]
    %v857 = vld [vmem:[%s843 + $0x68] sm:$0xff]
    %v858 = vld [vmem:[%s843 + $0x70] sm:$0xff]
    %v859 = vld [vmem:[%s843 + $0x78] sm:$0xff]
    %v860 = vmul.f32 %v835, %v844
    %v861 = vmul.f32 %v831, %v845
    %v862 = vmul.f32 %v827, %v846
    %v863 = vmul.f32 %v839, %v847
    %v864 = vmul.f32 %v836, %v848
    %v865 = vmul.f32 %v832, %v849
    %v866 = vmul.f32 %v828, %v850
    %v867 = vmul.f32 %v840, %v851
    %v868 = vmul.f32 %v837, %v852
    %v869 = vmul.f32 %v833, %v853
    %v870 = vmul.f32 %v829, %v854
    %v871 = vmul.f32 %v841, %v855
    %v872 = vmul.f32 %v838, %v856
    %v873 = vmul.f32 %v834, %v857
    %v874 = vmul.f32 %v830, %v858
    %v875 = vmul.f32 %v842, %v859
    %v876 = vadd.f32 %v778, %v860
    %v877 = vadd.f32 %v779, %v861
    %v878 = vadd.f32 %v780, %v862
    %v879 = vadd.f32 %v781, %v863
    %v880 = vadd.f32 %v782, %v864
    %v881 = vadd.f32 %v783, %v865
    %v882 = vadd.f32 %v784, %v866
    %v883 = vadd.f32 %v785, %v867
    %v884 = vadd.f32 %v786, %v868
    %v885 = vadd.f32 %v787, %v869
    %v886 = vadd.f32 %v788, %v870
    %v887 = vadd.f32 %v789, %v871
    %v888 = vadd.f32 %v790, %v872
    %v889 = vadd.f32 %v791, %v873
    %v890 = vadd.f32 %v792, %v874
    %v891 = vadd.f32 %v793, %v875
    %892 = vrot.lane.b32.xlu0 %v254, 112
    %v893 = vpop.permute.xlu0 %892
    %894 = vrot.lane.b32.xlu0 %v258, 112
    %v895 = vpop.permute.xlu0 %894
    %896 = vrot.lane.b32.xlu0 %v262, 112
    %v897 = vpop.permute.xlu0 %896
    %898 = vrot.lane.b32.xlu0 %v266, 112
    %v899 = vpop.permute.xlu0 %898
    %900 = vrot.lane.b32.xlu0 %v255, 112
    %v901 = vpop.permute.xlu0 %900
    %902 = vrot.lane.b32.xlu0 %v259, 112
    %v903 = vpop.permute.xlu0 %902
    %904 = vrot.lane.b32.xlu0 %v263, 112
    %v905 = vpop.permute.xlu0 %904
    %906 = vrot.lane.b32.xlu0 %v267, 112
    %v907 = vpop.permute.xlu0 %906
    %908 = vrot.lane.b32.xlu0 %v256, 112
    %v909 = vpop.permute.xlu0 %908
    %910 = vrot.lane.b32.xlu0 %v260, 112
    %v911 = vpop.permute.xlu0 %910
    %912 = vrot.lane.b32.xlu0 %v264, 112
    %v913 = vpop.permute.xlu0 %912
    %914 = vrot.lane.b32.xlu0 %v268, 112
    %v915 = vpop.permute.xlu0 %914
    %916 = vrot.lane.b32.xlu0 %v257, 112
    %v917 = vpop.permute.xlu0 %916
    %918 = vrot.lane.b32.xlu0 %v261, 112
    %v919 = vpop.permute.xlu0 %918
    %920 = vrot.lane.b32.xlu0 %v265, 112
    %v921 = vpop.permute.xlu0 %920
    %922 = vrot.lane.b32.xlu0 %v269, 112
    %v923 = vpop.permute.xlu0 %922
    %vm924 = vcmp.lt.s32.totalorder %v303, 112
    %v925 = vsel %vm924, %v909, %v917
    %v926 = vsel %vm924, %v911, %v919
    %v927 = vsel %vm924, %v913, %v921
    %v928 = vsel %vm924, %v915, %v923
    %v929 = vsel %vm924, %v901, %v909
    %v930 = vsel %vm924, %v903, %v911
    %v931 = vsel %vm924, %v905, %v913
    %v932 = vsel %vm924, %v907, %v915
    %v933 = vsel %vm924, %v893, %v901
    %v934 = vsel %vm924, %v895, %v903
    %v935 = vsel %vm924, %v897, %v905
    %v936 = vsel %vm924, %v899, %v907
    %v937 = vsel %vm924, %v917, %v893
    %v938 = vsel %vm924, %v919, %v895
    %v939 = vsel %vm924, %v921, %v897
    %v940 = vsel %vm924, %v923, %v899
    %s941 = scalar_lea.vmem [#allocation2], 896
    %v942 = vld [vmem:[%s941] sm:$0xff]
    %v943 = vld [vmem:[%s941 + $0x8] sm:$0xff]
    %v944 = vld [vmem:[%s941 + $0x10] sm:$0xff]
    %v945 = vld [vmem:[%s941 + $0x18] sm:$0xff]
    %v946 = vld [vmem:[%s941 + $0x20] sm:$0xff]
    %v947 = vld [vmem:[%s941 + $0x28] sm:$0xff]
    %v948 = vld [vmem:[%s941 + $0x30] sm:$0xff]
    %v949 = vld [vmem:[%s941 + $0x38] sm:$0xff]
    %v950 = vld [vmem:[%s941 + $0x40] sm:$0xff]
    %v951 = vld [vmem:[%s941 + $0x48] sm:$0xff]
    %v952 = vld [vmem:[%s941 + $0x50] sm:$0xff]
    %v953 = vld [vmem:[%s941 + $0x58] sm:$0xff]
    %v954 = vld [vmem:[%s941 + $0x60] sm:$0xff]
    %v955 = vld [vmem:[%s941 + $0x68] sm:$0xff]
    %v956 = vld [vmem:[%s941 + $0x70] sm:$0xff]
    %v957 = vld [vmem:[%s941 + $0x78] sm:$0xff]
    %v958 = vmul.f32 %v933, %v942
    %v959 = vmul.f32 %v929, %v943
    %v960 = vmul.f32 %v925, %v944
    %v961 = vmul.f32 %v937, %v945
    %v962 = vmul.f32 %v934, %v946
    %v963 = vmul.f32 %v930, %v947
    %v964 = vmul.f32 %v926, %v948
    %v965 = vmul.f32 %v938, %v949
    %v966 = vmul.f32 %v935, %v950
    %v967 = vmul.f32 %v931, %v951
    %v968 = vmul.f32 %v927, %v952
    %v969 = vmul.f32 %v939, %v953
    %v970 = vmul.f32 %v936, %v954
    %v971 = vmul.f32 %v932, %v955
    %v972 = vmul.f32 %v928, %v956
    %v973 = vmul.f32 %v940, %v957
    %v974 = vadd.f32 %v876, %v958
    %v975 = vadd.f32 %v877, %v959
    %v976 = vadd.f32 %v878, %v960
    %v977 = vadd.f32 %v879, %v961
    %v978 = vadd.f32 %v880, %v962
    %v979 = vadd.f32 %v881, %v963
    %v980 = vadd.f32 %v882, %v964
    %v981 = vadd.f32 %v883, %v965
    %v982 = vadd.f32 %v884, %v966
    %v983 = vadd.f32 %v885, %v967
    %v984 = vadd.f32 %v886, %v968
    %v985 = vadd.f32 %v887, %v969
    %v986 = vadd.f32 %v888, %v970
    %v987 = vadd.f32 %v889, %v971
    %v988 = vadd.f32 %v890, %v972
    %v989 = vadd.f32 %v891, %v973
    %990 = vrot.lane.b32.xlu0 %v254, 111
    %v991 = vpop.permute.xlu0 %990
    %992 = vrot.lane.b32.xlu0 %v258, 111
    %v993 = vpop.permute.xlu0 %992
    %994 = vrot.lane.b32.xlu0 %v262, 111
    %v995 = vpop.permute.xlu0 %994
    %996 = vrot.lane.b32.xlu0 %v266, 111
    %v997 = vpop.permute.xlu0 %996
    %998 = vrot.lane.b32.xlu0 %v255, 111
    %v999 = vpop.permute.xlu0 %998
    %1000 = vrot.lane.b32.xlu0 %v259, 111
    %v1001 = vpop.permute.xlu0 %1000
    %1002 = vrot.lane.b32.xlu0 %v263, 111
    %v1003 = vpop.permute.xlu0 %1002
    %1004 = vrot.lane.b32.xlu0 %v267, 111
    %v1005 = vpop.permute.xlu0 %1004
    %1006 = vrot.lane.b32.xlu0 %v256, 111
    %v1007 = vpop.permute.xlu0 %1006
    %1008 = vrot.lane.b32.xlu0 %v260, 111
    %v1009 = vpop.permute.xlu0 %1008
    %1010 = vrot.lane.b32.xlu0 %v264, 111
    %v1011 = vpop.permute.xlu0 %1010
    %1012 = vrot.lane.b32.xlu0 %v268, 111
    %v1013 = vpop.permute.xlu0 %1012
    %1014 = vrot.lane.b32.xlu0 %v257, 111
    %v1015 = vpop.permute.xlu0 %1014
    %1016 = vrot.lane.b32.xlu0 %v261, 111
    %v1017 = vpop.permute.xlu0 %1016
    %1018 = vrot.lane.b32.xlu0 %v265, 111
    %v1019 = vpop.permute.xlu0 %1018
    %1020 = vrot.lane.b32.xlu0 %v269, 111
    %v1021 = vpop.permute.xlu0 %1020
    %vm1022 = vcmp.lt.s32.totalorder %v303, 111
    %v1023 = vsel %vm1022, %v1007, %v1015
    %v1024 = vsel %vm1022, %v1009, %v1017
    %v1025 = vsel %vm1022, %v1011, %v1019
    %v1026 = vsel %vm1022, %v1013, %v1021
    %v1027 = vsel %vm1022, %v999, %v1007
    %v1028 = vsel %vm1022, %v1001, %v1009
    %v1029 = vsel %vm1022, %v1003, %v1011
    %v1030 = vsel %vm1022, %v1005, %v1013
    %v1031 = vsel %vm1022, %v991, %v999
    %v1032 = vsel %vm1022, %v993, %v1001
    %v1033 = vsel %vm1022, %v995, %v1003
    %v1034 = vsel %vm1022, %v997, %v1005
    %v1035 = vsel %vm1022, %v1015, %v991
    %v1036 = vsel %vm1022, %v1017, %v993
    %v1037 = vsel %vm1022, %v1019, %v995
    %v1038 = vsel %vm1022, %v1021, %v997
    %s1039 = scalar_lea.vmem [#allocation2], 1024
    %v1040 = vld [vmem:[%s1039] sm:$0xff]
    %v1041 = vld [vmem:[%s1039 + $0x8] sm:$0xff]
    %v1042 = vld [vmem:[%s1039 + $0x10] sm:$0xff]
    %v1043 = vld [vmem:[%s1039 + $0x18] sm:$0xff]
    %v1044 = vld [vmem:[%s1039 + $0x20] sm:$0xff]
    %v1045 = vld [vmem:[%s1039 + $0x28] sm:$0xff]
    %v1046 = vld [vmem:[%s1039 + $0x30] sm:$0xff]
    %v1047 = vld [vmem:[%s1039 + $0x38] sm:$0xff]
    %v1048 = vld [vmem:[%s1039 + $0x40] sm:$0xff]
    %v1049 = vld [vmem:[%s1039 + $0x48] sm:$0xff]
    %v1050 = vld [vmem:[%s1039 + $0x50] sm:$0xff]
    %v1051 = vld [vmem:[%s1039 + $0x58] sm:$0xff]
    %v1052 = vld [vmem:[%s1039 + $0x60] sm:$0xff]
    %v1053 = vld [vmem:[%s1039 + $0x68] sm:$0xff]
    %v1054 = vld [vmem:[%s1039 + $0x70] sm:$0xff]
    %v1055 = vld [vmem:[%s1039 + $0x78] sm:$0xff]
    %v1056 = vmul.f32 %v1031, %v1040
    %v1057 = vmul.f32 %v1027, %v1041
    %v1058 = vmul.f32 %v1023, %v1042
    %v1059 = vmul.f32 %v1035, %v1043
    %v1060 = vmul.f32 %v1032, %v1044
    %v1061 = vmul.f32 %v1028, %v1045
    %v1062 = vmul.f32 %v1024, %v1046
    %v1063 = vmul.f32 %v1036, %v1047
    %v1064 = vmul.f32 %v1033, %v1048
    %v1065 = vmul.f32 %v1029, %v1049
    %v1066 = vmul.f32 %v1025, %v1050
    %v1067 = vmul.f32 %v1037, %v1051
    %v1068 = vmul.f32 %v1034, %v1052
    %v1069 = vmul.f32 %v1030, %v1053
    %v1070 = vmul.f32 %v1026, %v1054
    %v1071 = vmul.f32 %v1038, %v1055
    %v1072 = vadd.f32 %v974, %v1056
    %v1073 = vadd.f32 %v975, %v1057
    %v1074 = vadd.f32 %v976, %v1058
    %v1075 = vadd.f32 %v977, %v1059
    %v1076 = vadd.f32 %v978, %v1060
    %v1077 = vadd.f32 %v979, %v1061
    %v1078 = vadd.f32 %v980, %v1062
    %v1079 = vadd.f32 %v981, %v1063
    %v1080 = vadd.f32 %v982, %v1064
    %v1081 = vadd.f32 %v983, %v1065
    %v1082 = vadd.f32 %v984, %v1066
    %v1083 = vadd.f32 %v985, %v1067
    %v1084 = vadd.f32 %v986, %v1068
    %v1085 = vadd.f32 %v987, %v1069
    %v1086 = vadd.f32 %v988, %v1070
    %v1087 = vadd.f32 %v989, %v1071
    %v1088 = vld [vmem:[%s3] sm:$0xff]
    %v1089 = vld [vmem:[%s3 + $0x8] sm:$0xff]
    %v1090 = vld [vmem:[%s3 + $0x10] sm:$0xff]
    %v1091 = vld [vmem:[%s3 + $0x18] sm:$0xff]
    %1093 = vset.pattern.permute.xlu0 0
    %1094 = vperm.xlu0 %1093, %v1088
    %v1095 = vpop.permute.xlu0 %1094
    %1098 = vset.pattern.permute.xlu0 0
    %1099 = vperm.xlu0 %1098, %v1089
    %v1100 = vpop.permute.xlu0 %1099
    %1103 = vset.pattern.permute.xlu0 0
    %1104 = vperm.xlu0 %1103, %v1090
    %v1105 = vpop.permute.xlu0 %1104
    %1108 = vset.pattern.permute.xlu0 0
    %1109 = vperm.xlu0 %1108, %v1091
    %v1110 = vpop.permute.xlu0 %1109
    %v1112 = vadd.f32 %v1072, %v1095
    %v1113 = vadd.f32 %v1073, %v1095
    %v1114 = vadd.f32 %v1074, %v1095
    %v1115 = vadd.f32 %v1075, %v1095
    %v1116 = vadd.f32 %v1076, %v1100
    %v1117 = vadd.f32 %v1077, %v1100
    %v1118 = vadd.f32 %v1078, %v1100
    %v1119 = vadd.f32 %v1079, %v1100
    %v1120 = vadd.f32 %v1080, %v1105
    %v1121 = vadd.f32 %v1081, %v1105
    %v1122 = vadd.f32 %v1082, %v1105
    %v1123 = vadd.f32 %v1083, %v1105
    %v1124 = vadd.f32 %v1084, %v1110
    %v1125 = vadd.f32 %v1085, %v1110
    %v1126 = vadd.f32 %v1086, %v1110
    %v1127 = vadd.f32 %v1087, %v1110
    %v1128 = vmax.f32 %v1112, 0.0
    %v1129 = vmax.f32 %v1113, 0.0
    %v1130 = vmax.f32 %v1114, 0.0
    %v1131 = vmax.f32 %v1115, 0.0
    %v1132 = vmax.f32 %v1116, 0.0
    %v1133 = vmax.f32 %v1117, 0.0
    %v1134 = vmax.f32 %v1118, 0.0
    %v1135 = vmax.f32 %v1119, 0.0
    %v1136 = vmax.f32 %v1120, 0.0
    %v1137 = vmax.f32 %v1121, 0.0
    %v1138 = vmax.f32 %v1122, 0.0
    %v1139 = vmax.f32 %v1123, 0.0
    %v1140 = vmax.f32 %v1124, 0.0
    %v1141 = vmax.f32 %v1125, 0.0
    %v1142 = vmax.f32 %v1126, 0.0
    %v1143 = vmax.f32 %v1127, 0.0
    %v1144 = vld [vmem:[%s4] sm:$0xff]
    %v1145 = vld [vmem:[%s5] sm:$0xff]
    %1147 = vset.pattern.permute.xlu0 0
    %1148 = vperm.xlu0 %1147, %v1145
    %v1149 = vpop.permute.xlu0 %1148
    %vm1151 = vcmask 261120
    %v1153 = vsel %vm1151, %v1144, 0
    %1155 = vmatprep.subr.mxu0 0.0
    %1156 = vmatpush1.msra.mxu0 0.0
    %1157 = vmatprep.subr.mxu0 0.0
    %1158 = vmatpush1.msra.mxu0 0.0
    %1159 = vmatprep.subr.mxu0 0.0
    %1160 = vmatpush1.msra.mxu0 0.0
    %1161 = vmatprep.subr.mxu0 0.0
    %1162 = vmatpush1.msra.mxu0 0.0
    %1163 = vmatprep.subr.mxu0 0.0
    %1164 = vmatpush1.msra.mxu0 0.0
    %1165 = vmatprep.subr.mxu0 0.0
    %1166 = vmatpush1.msra.mxu0 0.0
    %1167 = vmatprep.subr.mxu0 0.0
    %1168 = vmatpush1.msra.mxu0 0.0
    %1169 = vmatprep.subr.mxu0 0.0
    %1170 = vmatpush1.msra.mxu0 0.0
    %1171 = vmatprep.subr.mxu0 0.0
    %1172 = vmatpush1.msra.mxu0 0.0
    %1173 = vmatprep.subr.mxu0 0.0
    %1174 = vmatpush1.msra.mxu0 0.0
    %1175 = vmatprep.subr.mxu0 0.0
    %1176 = vmatpush1.msra.mxu0 0.0
    %1177 = vmatprep.subr.mxu0 0.0
    %1178 = vmatpush1.msra.mxu0 0.0
    %1179 = vmatprep.subr.mxu0 %v1141
    %1180 = vmatpush1.msra.mxu0 %v1140
    %1181 = vmatprep.subr.mxu0 %v1137
    %1182 = vmatpush1.msra.mxu0 %v1136
    %1183 = vmatprep.subr.mxu0 %v1133
    %1184 = vmatpush1.msra.mxu0 %v1132
    %1185 = vmatprep.subr.mxu0 %v1129
    %1186 = vmatpush1.msra.mxu0 %v1128
    %1187 = vmatprep.subr.mxu0 0.0
    %1188 = vmatpush2.msra.mxu0 0.0
    %1189 = vmatprep.subr.mxu0 0.0
    %1190 = vmatpush2.msra.mxu0 0.0
    %1191 = vmatprep.subr.mxu0 0.0
    %1192 = vmatpush2.msra.mxu0 0.0
    %1193 = vmatprep.subr.mxu0 0.0
    %1194 = vmatpush2.msra.mxu0 0.0
    %1195 = vmatprep.subr.mxu0 0.0
    %1196 = vmatpush2.msra.mxu0 0.0
    %1197 = vmatprep.subr.mxu0 0.0
    %1198 = vmatpush2.msra.mxu0 0.0
    %1199 = vmatprep.subr.mxu0 0.0
    %1200 = vmatpush2.msra.mxu0 0.0
    %1201 = vmatprep.subr.mxu0 0.0
    %1202 = vmatpush2.msra.mxu0 0.0
    %1203 = vmatprep.subr.mxu0 0.0
    %1204 = vmatpush2.msra.mxu0 0.0
    %1205 = vmatprep.subr.mxu0 0.0
    %1206 = vmatpush2.msra.mxu0 0.0
    %1207 = vmatprep.subr.mxu0 0.0
    %1208 = vmatpush2.msra.mxu0 0.0
    %1209 = vmatprep.subr.mxu0 0.0
    %1210 = vmatpush2.msra.mxu0 0.0
    %1211 = vmatprep.subr.mxu0 0.0
    %1212 = vmatpush2.msra.mxu0 0.0
    %1213 = vmatprep.subr.mxu0 0.0
    %1214 = vmatpush2.msra.mxu0 0.0
    %1215 = vmatprep.subr.mxu0 0.0
    %1216 = vmatpush2.msra.mxu0 0.0
    %1217 = vmatprep.subr.mxu0 0.0
    %1218 = vmatpush2.msra.mxu0 0.0
    %1219 = vmatprep.mubr.f32.mxu0 0.0
    %1220 = vmatmul.mubr.f32.gmra.mxu0 %v1153
    %v1221 = vpop.f32.mrf.mxu0
    %v1222 = vadd.f32 %v1149, %v1221
    %v1223 = vpop.f32.mrf.mxu0
    %v1224 = vadd.f32 %v1149, %v1223
    %1225 = vdwg.mxu0
    %1226 = vmatprep.subr.mxu0 0.0
    %1227 = vmatpush1.msra.mxu0 0.0
    %1228 = vmatprep.subr.mxu0 0.0
    %1229 = vmatpush1.msra.mxu0 0.0
    %1230 = vmatprep.subr.mxu0 0.0
    %1231 = vmatpush1.msra.mxu0 0.0
    %1232 = vmatprep.subr.mxu0 0.0
    %1233 = vmatpush1.msra.mxu0 0.0
    %1234 = vmatprep.subr.mxu0 0.0
    %1235 = vmatpush1.msra.mxu0 0.0
    %1236 = vmatprep.subr.mxu0 0.0
    %1237 = vmatpush1.msra.mxu0 0.0
    %1238 = vmatprep.subr.mxu0 0.0
    %1239 = vmatpush1.msra.mxu0 0.0
    %1240 = vmatprep.subr.mxu0 0.0
    %1241 = vmatpush1.msra.mxu0 0.0
    %1242 = vmatprep.subr.mxu0 0.0
    %1243 = vmatpush1.msra.mxu0 0.0
    %1244 = vmatprep.subr.mxu0 0.0
    %1245 = vmatpush1.msra.mxu0 0.0
    %1246 = vmatprep.subr.mxu0 0.0
    %1247 = vmatpush1.msra.mxu0 0.0
    %1248 = vmatprep.subr.mxu0 0.0
    %1249 = vmatpush1.msra.mxu0 0.0
    %1250 = vmatprep.subr.mxu0 %v1143
    %1251 = vmatpush1.msra.mxu0 %v1142
    %1252 = vmatprep.subr.mxu0 %v1139
    %1253 = vmatpush1.msra.mxu0 %v1138
    %1254 = vmatprep.subr.mxu0 %v1135
    %1255 = vmatpush1.msra.mxu0 %v1134
    %1256 = vmatprep.subr.mxu0 %v1131
    %1257 = vmatpush1.msra.mxu0 %v1130
    %1258 = vmatprep.subr.mxu0 0.0
    %1259 = vmatpush2.msra.mxu0 0.0
    %1260 = vmatprep.subr.mxu0 0.0
    %1261 = vmatpush2.msra.mxu0 0.0
    %1262 = vmatprep.subr.mxu0 0.0
    %1263 = vmatpush2.msra.mxu0 0.0
    %1264 = vmatprep.subr.mxu0 0.0
    %1265 = vmatpush2.msra.mxu0 0.0
    %1266 = vmatprep.subr.mxu0 0.0
    %1267 = vmatpush2.msra.mxu0 0.0
    %1268 = vmatprep.subr.mxu0 0.0
    %1269 = vmatpush2.msra.mxu0 0.0
    %1270 = vmatprep.subr.mxu0 0.0
    %1271 = vmatpush2.msra.mxu0 0.0
    %1272 = vmatprep.subr.mxu0 0.0
    %1273 = vmatpush2.msra.mxu0 0.0
    %1274 = vmatprep.subr.mxu0 0.0
    %1275 = vmatpush2.msra.mxu0 0.0
    %1276 = vmatprep.subr.mxu0 0.0
    %1277 = vmatpush2.msra.mxu0 0.0
    %1278 = vmatprep.subr.mxu0 0.0
    %1279 = vmatpush2.msra.mxu0 0.0
    %1280 = vmatprep.subr.mxu0 0.0
    %1281 = vmatpush2.msra.mxu0 0.0
    %1282 = vmatprep.subr.mxu0 0.0
    %1283 = vmatpush2.msra.mxu0 0.0
    %1284 = vmatprep.subr.mxu0 0.0
    %1285 = vmatpush2.msra.mxu0 0.0
    %1286 = vmatprep.subr.mxu0 0.0
    %1287 = vmatpush2.msra.mxu0 0.0
    %1288 = vmatprep.subr.mxu0 0.0
    %1289 = vmatpush2.msra.mxu0 0.0
    %1290 = vmatprep.mubr.f32.mxu0 0.0
    %1291 = vmatmul.mubr.f32.gmra.mxu0 %v1153
    %v1292 = vpop.f32.mrf.mxu0
    %v1293 = vadd.f32 %v1149, %v1292
    %v1294 = vpop.f32.mrf.mxu0
    %v1295 = vadd.f32 %v1149, %v1294
    %1296 = vdwg.mxu0
    %v1297 = vadd.f32 %v1222, %v38
    %v1298 = vadd.f32 %v1224, %v39
    %v1299 = vadd.f32 %v1293, %v40
    %v1300 = vadd.f32 %v1295, %v41
    %1301 = vst [vmem:[#allocation5] sm:$0xff] %v1297
    %1302 = vst [vmem:[#allocation5 + $0x8] sm:$0xff] %v1298
    %1303 = vst [vmem:[#allocation5 + $0x10] sm:$0xff] %v1299
    %1304 = vst [vmem:[#allocation5 + $0x18] sm:$0xff] %v1300
    // Predicated region
    $region30: #{tpu_custom_call.1} parent=1 // pred_check
      _
    $region31: #{tpu_custom_call.1} parent=1 // pred_check_branch
      %1306 = sbr.rel (0) target = $region33
    $region32: #{tpu_custom_call.1} parent=1 // pred_region
      %s1308 = ssub.s32 512, 512
      %1309 = vsyncadd [#allocation4], %s1308
      %s1311 = sshll.u32 [#allocation5], 4
      %s1312 = int_to_ptr.vmem [resolvable:$true] %s1311
      %1314 = dma.vmem_to_hbm [thread:$0]  %s1312, 512, %s6, [#allocation4]
    $region33: #{tpu_custom_call.1} parent=1 // pred_fallthru
      _
    // Predicated region
    $region34: #{tpu_custom_call.1} parent=1 // pred_check
      _
    $region35: #{tpu_custom_call.1} parent=1 // pred_check_branch
      %1316 = sbr.rel (0) target = $region37
    $region36: #{tpu_custom_call.1} parent=1 // pred_region
      %1317 = dma.done [#allocation4], 512
    $region37: #{tpu_custom_call.1} parent=1 // pred_fallthru
      _
    %1318 = vsyncpa [#allocation3], 1
    %1319 = vsyncpa [#allocation4], 1

</llo_original>
